<compile_context>
chip_gen: v7x
topology: tpu7x:2x2x1
jax: 0.10.0
libtpu: 0.0.40
codegen_flags: <defaults>
</compile_context>

<pallas_src>
import functools

import jax
import jax.numpy as jnp
from jax.experimental import pallas as pl
from jax.experimental.pallas import tpu as pltpu

LANE = 128  # TPU lane width; padded feature dims are multiples of this.


def _round_up(x, m):
    return ((x + m - 1) // m) * m


def _pad2d(w, rows, cols):
    out = jnp.zeros((rows, cols), jnp.float32)
    return out.at[: w.shape[0], : w.shape[1]].set(w)


def _pad1d(b, n):
    out = jnp.zeros((n,), jnp.float32)
    return out.at[: b.shape[0]].set(b)


def _mlp_kernel(x_ref, w0_ref, b0_ref, wh_ref, bh_ref, wo_ref, bo_ref, o_ref,
                *, num_hidden_layers, out_dim):
    """One batch tile: x [TB, F] -> out [TB, out_dim]."""
    # First linear (no ReLU after it, matching the PyTorch module).
    x = x_ref[...].astype(jnp.bfloat16)                                   # [TB, F]
    h = jnp.dot(x, w0_ref[...],                                           # [F, H] bf16
                preferred_element_type=jnp.float32) + b0_ref[...]         # f32

    # hidden_layers x (Linear -> ReLU); fully unrolled, static weight slices.
    for i in range(num_hidden_layers):
        z = jnp.dot(h.astype(jnp.bfloat16), wh_ref[i],                    # [H, H] bf16
                    preferred_element_type=jnp.float32) + bh_ref[i]
        h = jnp.maximum(z, 0.0)                                           # f32 VPU

    # Output linear (no activation); only the first `out_dim` lanes are real.
    z = jnp.dot(h.astype(jnp.bfloat16), wo_ref[...],
                preferred_element_type=jnp.float32) + bo_ref[...]
    o_ref[...] = z[:, :out_dim]


class DisplacementNetPallas:
    """JAX/Pallas port of blockworld2.displacement_net.DisplacementNet."""

    def __init__(self, num_features=20, hidden_size=512, hidden_layers=8,
                 block_rows=512, key=jax.random.PRNGKey(42)):
        self.num_features = num_features
        self.hidden_size = hidden_size
        self.hidden_layers = hidden_layers
        self.out_dim = 2
        self.block_rows = max(8, _round_up(block_rows, 8))
        self.h_pad = _round_up(hidden_size, LANE)

        # Deterministic synthetic parameters in PyTorch nn.Linear convention:
        # weight [out, in], bias [out]; y = x @ W.T + b.
        keys = jax.random.split(key, 2 * (hidden_layers + 2))
        k = iter(keys)

        def linear(in_dim, out_dim):
            bound = 1.0 / jnp.sqrt(jnp.float32(in_dim))
            w = jax.random.uniform(next(k), (out_dim, in_dim),
                                   jnp.float32, -bound, bound)
            b = jax.random.uniform(next(k), (out_dim,),
                                   jnp.float32, -bound, bound)
            return w, b

        self.w0, self.b0 = linear(num_features, hidden_size)
        self.wh, self.bh = [], []
        for _ in range(hidden_layers):
            w, b = linear(hidden_size, hidden_size)
            self.wh.append(w)
            self.bh.append(b)
        self.wo, self.bo = linear(hidden_size, self.out_dim)

        # Kernel-side parameters: transposed ([in, out]), feature dims padded
        # to lane multiples, weights cast to bf16 (MXU operands), biases f32.
        H = self.h_pad
        self._w0p = _pad2d(self.w0.T, num_features, H).astype(jnp.bfloat16)   # [F, H]
        self._b0p = _pad1d(self.b0, H)[None, :]                               # [1, H] f32
        self._whp = jnp.stack(
            [_pad2d(w.T, H, H) for w in self.wh]).astype(jnp.bfloat16)        # [L, H, H]
        self._bhp = jnp.stack(
            [_pad1d(b, H)[None, :] for b in self.bh])                         # [L, 1, H] f32
        self._wop = _pad2d(self.wo.T, H, LANE).astype(jnp.bfloat16)           # [H, 128]
        self._bop = _pad1d(self.bo, LANE)[None, :]                            # [1, 128] f32

    def __call__(self, x):
        # x: [B, num_features] float32.  No lane padding of x (saves HBM).
        B = x.shape[0]
        TB = min(self.block_rows, _round_up(B, 8))
        B_pad = _round_up(B, TB)
        x = x.astype(jnp.float32)
        if B_pad != B:
            x = jnp.pad(x, ((0, B_pad - B), (0, 0)))

        nb = B_pad // TB
        L = self.hidden_layers
        F = self.num_features
        H = self.h_pad

        kernel = functools.partial(_mlp_kernel,
                                   num_hidden_layers=L,
                                   out_dim=self.out_dim)

        out = pl.pallas_call(
            kernel,
            out_shape=jax.ShapeDtypeStruct((B_pad, self.out_dim), jnp.float32),
            grid_spec=pltpu.PrefetchScalarGridSpec(
                num_scalar_prefetch=0,
                grid=(nb,),
                in_specs=[
                    pl.BlockSpec((TB, F), lambda i: (i, 0)),             # x tile (pipelined)
                    pl.BlockSpec((F, H), lambda i: (0, 0)),              # w0 (VMEM-resident)
                    pl.BlockSpec((1, H), lambda i: (0, 0)),              # b0
                    pl.BlockSpec((L, H, H), lambda i: (0, 0, 0)),        # wh stack
                    pl.BlockSpec((L, 1, H), lambda i: (0, 0, 0)),        # bh stack
                    pl.BlockSpec((H, LANE), lambda i: (0, 0)),           # wo
                    pl.BlockSpec((1, LANE), lambda i: (0, 0)),           # bo
                ],
                out_specs=pl.BlockSpec((TB, self.out_dim), lambda i: (i, 0)),
            ),
            compiler_params=pltpu.CompilerParams(
                dimension_semantics=("parallel",)),   # v7x: shard batch over 2 TCs
        )(x, self._w0p, self._b0p, self._whp, self._bhp, self._wop, self._bop)

        return out[:B]

    # ---- references -------------------------------------------------------

    def reference(self, x):
        """Pure-JAX f32 reference matching the PyTorch forward exactly."""
        h = x.astype(jnp.float32) @ self.w0.T + self.b0
        for w, b in zip(self.wh, self.bh):
            h = jnp.maximum(h @ w.T + b, 0.0)
        return h @ self.wo.T + self.bo

    def reference_mixed(self, x):
        """Emulates kernel precision: bf16 matmul operands, f32 accumulate."""
        def mm(a, w):
            return jnp.dot(a.astype(jnp.bfloat16), w.T.astype(jnp.bfloat16),
                           preferred_element_type=jnp.float32)
        h = mm(x.astype(jnp.float32), self.w0) + self.b0
        for w, b in zip(self.wh, self.bh):
            h = jnp.maximum(mm(h, w) + b, 0.0)
        return mm(h, self.wo) + self.bo


if __name__ == "__main__":
    # Small shapes consistent with the module: num_features=20, hidden_layers=8,
    # hidden=32 (the module defaults to 512; same kernel handles both since
    # hidden dims are padded to lane multiples).  batch=50 with a 32-row tile
    # exercises both the batch-tile grid (2 pipelined steps) and row padding.
    net = DisplacementNetPallas(num_features=20, hidden_size=32,
                                hidden_layers=8, block_rows=32,
                                key=jax.random.PRNGKey(42))

    x = jax.random.normal(jax.random.PRNGKey(0), (50, 20), jnp.float32)

    out = jax.block_until_ready(net(x))
    assert out.shape == (50, 2), out.shape

    # Tight check against a mixed-precision (bf16 operands, f32 accum) reference
    # that mirrors the kernel's arithmetic exactly.
    ref_mixed = net.reference_mixed(x)
    assert jnp.allclose(out, ref_mixed, rtol=2e-3, atol=2e-3), (
        float(jnp.max(jnp.abs(out - ref_mixed))))

    # Looser check against the exact f32 PyTorch-equivalent forward (bf16
    # operand rounding accumulated across 10 chained layers).
    ref_f32 = net.reference(x)
    assert jnp.allclose(out, ref_f32, rtol=5e-2, atol=5e-2), (
        float(jnp.max(jnp.abs(out - ref_f32))))

    print("KERNEL_OK")
</pallas_src>

<mosaic_0001>
module attributes {stable_mosaic.version = 11 : i64} {
  func.func @_mlp_kernel(%arg0: i32, %arg1: memref<32x20xf32, #tpu.memory_space<vmem>>, %arg2: memref<20x128xbf16, #tpu.memory_space<vmem>>, %arg3: memref<1x128xf32, #tpu.memory_space<vmem>>, %arg4: memref<8x128x128xbf16, #tpu.memory_space<vmem>>, %arg5: memref<8x1x128xf32, #tpu.memory_space<vmem>>, %arg6: memref<128x128xbf16, #tpu.memory_space<vmem>>, %arg7: memref<1x128xf32, #tpu.memory_space<vmem>>, %arg8: memref<32x2xf32, #tpu.memory_space<vmem>>) attributes {dimension_semantics = [#tpu.dimension_semantics<parallel>], iteration_bounds = array<i64: 2>, scalar_prefetch = 0 : i64, scratch_operands = 0 : i64, tpu.core_type = #tpu.core_type<tc>, window_params = [{transform_indices = @transform_0, window_bounds = array<i64: 32, 20>}, {pipeline_mode = #tpu.pipeline_mode<synchronous>, transform_indices = @transform_1, window_bounds = array<i64: 20, 128>}, {pipeline_mode = #tpu.pipeline_mode<synchronous>, transform_indices = @transform_2, window_bounds = array<i64: 1, 128>}, {pipeline_mode = #tpu.pipeline_mode<synchronous>, transform_indices = @transform_3, window_bounds = array<i64: 8, 128, 128>}, {pipeline_mode = #tpu.pipeline_mode<synchronous>, transform_indices = @transform_4, window_bounds = array<i64: 8, 1, 128>}, {pipeline_mode = #tpu.pipeline_mode<synchronous>, transform_indices = @transform_5, window_bounds = array<i64: 128, 128>}, {pipeline_mode = #tpu.pipeline_mode<synchronous>, transform_indices = @transform_6, window_bounds = array<i64: 1, 128>}, {transform_indices = @transform_7, window_bounds = array<i64: 32, 2>}]} {
    %c0 = arith.constant 0 : index
    %c0_0 = arith.constant 0 : index
    %0 = vector.load %arg1[%c0, %c0_0] : memref<32x20xf32, #tpu.memory_space<vmem>>, vector<32x20xf32>
    %1 = arith.truncf %0 : vector<32x20xf32> to vector<32x20xbf16>
    %c0_1 = arith.constant 0 : index
    %c0_2 = arith.constant 0 : index
    %2 = vector.load %arg2[%c0_1, %c0_2] : memref<20x128xbf16, #tpu.memory_space<vmem>>, vector<20x128xbf16>
    %cst = arith.constant dense<0.000000e+00> : vector<32x128xf32>
    %3 = tpu.matmul %1, %2, %cst {dimension_numbers = #tpu.dot_dimension_numbers<[1], [0], [0], [1], [0, 0, 1, 1], [], []>} : vector<32x20xbf16>, vector<20x128xbf16>, vector<32x128xf32> -> vector<32x128xf32>
    %c0_3 = arith.constant 0 : index
    %c0_4 = arith.constant 0 : index
    %4 = vector.load %arg3[%c0_3, %c0_4] : memref<1x128xf32, #tpu.memory_space<vmem>>, vector<1x128xf32>
    %5 = vector.broadcast %4 : vector<1x128xf32> to vector<32x128xf32>
    %6 = arith.addf %3, %5 : vector<32x128xf32>
    %7 = arith.truncf %6 : vector<32x128xf32> to vector<32x128xbf16>
    %c0_5 = arith.constant 0 : index
    %c0_6 = arith.constant 0 : index
    %c0_7 = arith.constant 0 : index
    %8 = vector.load %arg4[%c0_5, %c0_6, %c0_7] : memref<8x128x128xbf16, #tpu.memory_space<vmem>>, vector<1x128x128xbf16>
    %9 = vector.shape_cast %8 : vector<1x128x128xbf16> to vector<128x128xbf16>
    %cst_8 = arith.constant dense<0.000000e+00> : vector<32x128xf32>
    %10 = tpu.matmul %7, %9, %cst_8 {dimension_numbers = #tpu.dot_dimension_numbers<[1], [0], [0], [1], [0, 0, 1, 1], [], []>} : vector<32x128xbf16>, vector<128x128xbf16>, vector<32x128xf32> -> vector<32x128xf32>
    %c0_9 = arith.constant 0 : index
    %c0_10 = arith.constant 0 : index
    %c0_11 = arith.constant 0 : index
    %11 = vector.load %arg5[%c0_9, %c0_10, %c0_11] : memref<8x1x128xf32, #tpu.memory_space<vmem>>, vector<1x1x128xf32>
    %12 = vector.shape_cast %11 : vector<1x1x128xf32> to vector<1x128xf32>
    %13 = vector.broadcast %12 : vector<1x128xf32> to vector<32x128xf32>
    %14 = arith.addf %10, %13 : vector<32x128xf32>
    %cst_12 = arith.constant 0.000000e+00 : f32
    %15 = vector.broadcast %cst_12 : f32 to vector<32x128xf32>
    %16 = arith.maximumf %14, %15 : vector<32x128xf32>
    %17 = arith.truncf %16 : vector<32x128xf32> to vector<32x128xbf16>
    %c1 = arith.constant 1 : index
    %c0_13 = arith.constant 0 : index
    %c0_14 = arith.constant 0 : index
    %18 = vector.load %arg4[%c1, %c0_13, %c0_14] : memref<8x128x128xbf16, #tpu.memory_space<vmem>>, vector<1x128x128xbf16>
    %19 = vector.shape_cast %18 : vector<1x128x128xbf16> to vector<128x128xbf16>
    %cst_15 = arith.constant dense<0.000000e+00> : vector<32x128xf32>
    %20 = tpu.matmul %17, %19, %cst_15 {dimension_numbers = #tpu.dot_dimension_numbers<[1], [0], [0], [1], [0, 0, 1, 1], [], []>} : vector<32x128xbf16>, vector<128x128xbf16>, vector<32x128xf32> -> vector<32x128xf32>
    %c1_16 = arith.constant 1 : index
    %c0_17 = arith.constant 0 : index
    %c0_18 = arith.constant 0 : index
    %21 = vector.load %arg5[%c1_16, %c0_17, %c0_18] : memref<8x1x128xf32, #tpu.memory_space<vmem>>, vector<1x1x128xf32>
    %22 = vector.shape_cast %21 : vector<1x1x128xf32> to vector<1x128xf32>
    %23 = vector.broadcast %22 : vector<1x128xf32> to vector<32x128xf32>
    %24 = arith.addf %20, %23 : vector<32x128xf32>
    %cst_19 = arith.constant 0.000000e+00 : f32
    %25 = vector.broadcast %cst_19 : f32 to vector<32x128xf32>
    %26 = arith.maximumf %24, %25 : vector<32x128xf32>
    %27 = arith.truncf %26 : vector<32x128xf32> to vector<32x128xbf16>
    %c2 = arith.constant 2 : index
    %c0_20 = arith.constant 0 : index
    %c0_21 = arith.constant 0 : index
    %28 = vector.load %arg4[%c2, %c0_20, %c0_21] : memref<8x128x128xbf16, #tpu.memory_space<vmem>>, vector<1x128x128xbf16>
    %29 = vector.shape_cast %28 : vector<1x128x128xbf16> to vector<128x128xbf16>
    %cst_22 = arith.constant dense<0.000000e+00> : vector<32x128xf32>
    %30 = tpu.matmul %27, %29, %cst_22 {dimension_numbers = #tpu.dot_dimension_numbers<[1], [0], [0], [1], [0, 0, 1, 1], [], []>} : vector<32x128xbf16>, vector<128x128xbf16>, vector<32x128xf32> -> vector<32x128xf32>
    %c2_23 = arith.constant 2 : index
    %c0_24 = arith.constant 0 : index
    %c0_25 = arith.constant 0 : index
    %31 = vector.load %arg5[%c2_23, %c0_24, %c0_25] : memref<8x1x128xf32, #tpu.memory_space<vmem>>, vector<1x1x128xf32>
    %32 = vector.shape_cast %31 : vector<1x1x128xf32> to vector<1x128xf32>
    %33 = vector.broadcast %32 : vector<1x128xf32> to vector<32x128xf32>
    %34 = arith.addf %30, %33 : vector<32x128xf32>
    %cst_26 = arith.constant 0.000000e+00 : f32
    %35 = vector.broadcast %cst_26 : f32 to vector<32x128xf32>
    %36 = arith.maximumf %34, %35 : vector<32x128xf32>
    %37 = arith.truncf %36 : vector<32x128xf32> to vector<32x128xbf16>
    %c3 = arith.constant 3 : index
    %c0_27 = arith.constant 0 : index
    %c0_28 = arith.constant 0 : index
    %38 = vector.load %arg4[%c3, %c0_27, %c0_28] : memref<8x128x128xbf16, #tpu.memory_space<vmem>>, vector<1x128x128xbf16>
    %39 = vector.shape_cast %38 : vector<1x128x128xbf16> to vector<128x128xbf16>
    %cst_29 = arith.constant dense<0.000000e+00> : vector<32x128xf32>
    %40 = tpu.matmul %37, %39, %cst_29 {dimension_numbers = #tpu.dot_dimension_numbers<[1], [0], [0], [1], [0, 0, 1, 1], [], []>} : vector<32x128xbf16>, vector<128x128xbf16>, vector<32x128xf32> -> vector<32x128xf32>
    %c3_30 = arith.constant 3 : index
    %c0_31 = arith.constant 0 : index
    %c0_32 = arith.constant 0 : index
    %41 = vector.load %arg5[%c3_30, %c0_31, %c0_32] : memref<8x1x128xf32, #tpu.memory_space<vmem>>, vector<1x1x128xf32>
    %42 = vector.shape_cast %41 : vector<1x1x128xf32> to vector<1x128xf32>
    %43 = vector.broadcast %42 : vector<1x128xf32> to vector<32x128xf32>
    %44 = arith.addf %40, %43 : vector<32x128xf32>
    %cst_33 = arith.constant 0.000000e+00 : f32
    %45 = vector.broadcast %cst_33 : f32 to vector<32x128xf32>
    %46 = arith.maximumf %44, %45 : vector<32x128xf32>
    %47 = arith.truncf %46 : vector<32x128xf32> to vector<32x128xbf16>
    %c4 = arith.constant 4 : index
    %c0_34 = arith.constant 0 : index
    %c0_35 = arith.constant 0 : index
    %48 = vector.load %arg4[%c4, %c0_34, %c0_35] : memref<8x128x128xbf16, #tpu.memory_space<vmem>>, vector<1x128x128xbf16>
    %49 = vector.shape_cast %48 : vector<1x128x128xbf16> to vector<128x128xbf16>
    %cst_36 = arith.constant dense<0.000000e+00> : vector<32x128xf32>
    %50 = tpu.matmul %47, %49, %cst_36 {dimension_numbers = #tpu.dot_dimension_numbers<[1], [0], [0], [1], [0, 0, 1, 1], [], []>} : vector<32x128xbf16>, vector<128x128xbf16>, vector<32x128xf32> -> vector<32x128xf32>
    %c4_37 = arith.constant 4 : index
    %c0_38 = arith.constant 0 : index
    %c0_39 = arith.constant 0 : index
    %51 = vector.load %arg5[%c4_37, %c0_38, %c0_39] : memref<8x1x128xf32, #tpu.memory_space<vmem>>, vector<1x1x128xf32>
    %52 = vector.shape_cast %51 : vector<1x1x128xf32> to vector<1x128xf32>
    %53 = vector.broadcast %52 : vector<1x128xf32> to vector<32x128xf32>
    %54 = arith.addf %50, %53 : vector<32x128xf32>
    %cst_40 = arith.constant 0.000000e+00 : f32
    %55 = vector.broadcast %cst_40 : f32 to vector<32x128xf32>
    %56 = arith.maximumf %54, %55 : vector<32x128xf32>
    %57 = arith.truncf %56 : vector<32x128xf32> to vector<32x128xbf16>
    %c5 = arith.constant 5 : index
    %c0_41 = arith.constant 0 : index
    %c0_42 = arith.constant 0 : index
    %58 = vector.load %arg4[%c5, %c0_41, %c0_42] : memref<8x128x128xbf16, #tpu.memory_space<vmem>>, vector<1x128x128xbf16>
    %59 = vector.shape_cast %58 : vector<1x128x128xbf16> to vector<128x128xbf16>
    %cst_43 = arith.constant dense<0.000000e+00> : vector<32x128xf32>
    %60 = tpu.matmul %57, %59, %cst_43 {dimension_numbers = #tpu.dot_dimension_numbers<[1], [0], [0], [1], [0, 0, 1, 1], [], []>} : vector<32x128xbf16>, vector<128x128xbf16>, vector<32x128xf32> -> vector<32x128xf32>
    %c5_44 = arith.constant 5 : index
    %c0_45 = arith.constant 0 : index
    %c0_46 = arith.constant 0 : index
    %61 = vector.load %arg5[%c5_44, %c0_45, %c0_46] : memref<8x1x128xf32, #tpu.memory_space<vmem>>, vector<1x1x128xf32>
    %62 = vector.shape_cast %61 : vector<1x1x128xf32> to vector<1x128xf32>
    %63 = vector.broadcast %62 : vector<1x128xf32> to vector<32x128xf32>
    %64 = arith.addf %60, %63 : vector<32x128xf32>
    %cst_47 = arith.constant 0.000000e+00 : f32
    %65 = vector.broadcast %cst_47 : f32 to vector<32x128xf32>
    %66 = arith.maximumf %64, %65 : vector<32x128xf32>
    %67 = arith.truncf %66 : vector<32x128xf32> to vector<32x128xbf16>
    %c6 = arith.constant 6 : index
    %c0_48 = arith.constant 0 : index
    %c0_49 = arith.constant 0 : index
    %68 = vector.load %arg4[%c6, %c0_48, %c0_49] : memref<8x128x128xbf16, #tpu.memory_space<vmem>>, vector<1x128x128xbf16>
    %69 = vector.shape_cast %68 : vector<1x128x128xbf16> to vector<128x128xbf16>
    %cst_50 = arith.constant dense<0.000000e+00> : vector<32x128xf32>
    %70 = tpu.matmul %67, %69, %cst_50 {dimension_numbers = #tpu.dot_dimension_numbers<[1], [0], [0], [1], [0, 0, 1, 1], [], []>} : vector<32x128xbf16>, vector<128x128xbf16>, vector<32x128xf32> -> vector<32x128xf32>
    %c6_51 = arith.constant 6 : index
    %c0_52 = arith.constant 0 : index
    %c0_53 = arith.constant 0 : index
    %71 = vector.load %arg5[%c6_51, %c0_52, %c0_53] : memref<8x1x128xf32, #tpu.memory_space<vmem>>, vector<1x1x128xf32>
    %72 = vector.shape_cast %71 : vector<1x1x128xf32> to vector<1x128xf32>
    %73 = vector.broadcast %72 : vector<1x128xf32> to vector<32x128xf32>
    %74 = arith.addf %70, %73 : vector<32x128xf32>
    %cst_54 = arith.constant 0.000000e+00 : f32
    %75 = vector.broadcast %cst_54 : f32 to vector<32x128xf32>
    %76 = arith.maximumf %74, %75 : vector<32x128xf32>
    %77 = arith.truncf %76 : vector<32x128xf32> to vector<32x128xbf16>
    %c7 = arith.constant 7 : index
    %c0_55 = arith.constant 0 : index
    %c0_56 = arith.constant 0 : index
    %78 = vector.load %arg4[%c7, %c0_55, %c0_56] : memref<8x128x128xbf16, #tpu.memory_space<vmem>>, vector<1x128x128xbf16>
    %79 = vector.shape_cast %78 : vector<1x128x128xbf16> to vector<128x128xbf16>
    %cst_57 = arith.constant dense<0.000000e+00> : vector<32x128xf32>
    %80 = tpu.matmul %77, %79, %cst_57 {dimension_numbers = #tpu.dot_dimension_numbers<[1], [0], [0], [1], [0, 0, 1, 1], [], []>} : vector<32x128xbf16>, vector<128x128xbf16>, vector<32x128xf32> -> vector<32x128xf32>
    %c7_58 = arith.constant 7 : index
    %c0_59 = arith.constant 0 : index
    %c0_60 = arith.constant 0 : index
    %81 = vector.load %arg5[%c7_58, %c0_59, %c0_60] : memref<8x1x128xf32, #tpu.memory_space<vmem>>, vector<1x1x128xf32>
    %82 = vector.shape_cast %81 : vector<1x1x128xf32> to vector<1x128xf32>
    %83 = vector.broadcast %82 : vector<1x128xf32> to vector<32x128xf32>
    %84 = arith.addf %80, %83 : vector<32x128xf32>
    %cst_61 = arith.constant 0.000000e+00 : f32
    %85 = vector.broadcast %cst_61 : f32 to vector<32x128xf32>
    %86 = arith.maximumf %84, %85 : vector<32x128xf32>
    %87 = arith.truncf %86 : vector<32x128xf32> to vector<32x128xbf16>
    %c0_62 = arith.constant 0 : index
    %c0_63 = arith.constant 0 : index
    %88 = vector.load %arg6[%c0_62, %c0_63] : memref<128x128xbf16, #tpu.memory_space<vmem>>, vector<128x128xbf16>
    %cst_64 = arith.constant dense<0.000000e+00> : vector<32x128xf32>
    %89 = tpu.matmul %87, %88, %cst_64 {dimension_numbers = #tpu.dot_dimension_numbers<[1], [0], [0], [1], [0, 0, 1, 1], [], []>} : vector<32x128xbf16>, vector<128x128xbf16>, vector<32x128xf32> -> vector<32x128xf32>
    %c0_65 = arith.constant 0 : index
    %c0_66 = arith.constant 0 : index
    %90 = vector.load %arg7[%c0_65, %c0_66] : memref<1x128xf32, #tpu.memory_space<vmem>>, vector<1x128xf32>
    %91 = vector.broadcast %90 : vector<1x128xf32> to vector<32x128xf32>
    %92 = arith.addf %89, %91 : vector<32x128xf32>
    %93 = vector.extract_strided_slice %92 {offsets = [0, 0], sizes = [32, 2], strides = [1, 1]} : vector<32x128xf32> to vector<32x2xf32>
    %c0_67 = arith.constant 0 : index
    %c0_68 = arith.constant 0 : index
    %94 = vector.load %arg8[%c0_67, %c0_68] : memref<32x2xf32, #tpu.memory_space<vmem>>, vector<32x2xf32>
    tpu.vector_store %arg8[%c0_67, %c0_68], %93 {strides = array<i32>} : memref<32x2xf32, #tpu.memory_space<vmem>>, vector<32x2xf32>,
    return
  }
  func.func @transform_0(%arg0: i32) -> (i32, i32) {
    %c0_i32 = arith.constant 0 : i32
    %c0_i32_0 = arith.constant 0 : i32
    return %arg0, %c0_i32 : i32, i32
  }
  func.func @transform_1(%arg0: i32) -> (i32, i32) {
    %c0_i32 = arith.constant 0 : i32
    %c0_i32_0 = arith.constant 0 : i32
    %c0_i32_1 = arith.constant 0 : i32
    return %c0_i32, %c0_i32_0 : i32, i32
  }
  func.func @transform_2(%arg0: i32) -> (i32, i32) {
    %c0_i32 = arith.constant 0 : i32
    %c0_i32_0 = arith.constant 0 : i32
    %c0_i32_1 = arith.constant 0 : i32
    return %c0_i32, %c0_i32_0 : i32, i32
  }
  func.func @transform_3(%arg0: i32) -> (i32, i32, i32) {
    %c0_i32 = arith.constant 0 : i32
    %c0_i32_0 = arith.constant 0 : i32
    %c0_i32_1 = arith.constant 0 : i32
    %c0_i32_2 = arith.constant 0 : i32
    return %c0_i32, %c0_i32_0, %c0_i32_1 : i32, i32, i32
  }
  func.func @transform_4(%arg0: i32) -> (i32, i32, i32) {
    %c0_i32 = arith.constant 0 : i32
    %c0_i32_0 = arith.constant 0 : i32
    %c0_i32_1 = arith.constant 0 : i32
    %c0_i32_2 = arith.constant 0 : i32
    return %c0_i32, %c0_i32_0, %c0_i32_1 : i32, i32, i32
  }
  func.func @transform_5(%arg0: i32) -> (i32, i32) {
    %c0_i32 = arith.constant 0 : i32
    %c0_i32_0 = arith.constant 0 : i32
    %c0_i32_1 = arith.constant 0 : i32
    return %c0_i32, %c0_i32_0 : i32, i32
  }
  func.func @transform_6(%arg0: i32) -> (i32, i32) {
    %c0_i32 = arith.constant 0 : i32
    %c0_i32_0 = arith.constant 0 : i32
    %c0_i32_1 = arith.constant 0 : i32
    return %c0_i32, %c0_i32_0 : i32, i32
  }
  func.func @transform_7(%arg0: i32) -> (i32, i32) {
    %c0_i32 = arith.constant 0 : i32
    %c0_i32_0 = arith.constant 0 : i32
    return %arg0, %c0_i32 : i32, i32
  }
}

</mosaic_0001>

<llo_original>
// kernel: tpu_custom_call.1
$region0: #{tpu_custom_call.1}
  #allocation0 [shape = 'u32[]', space=smem, size = 0x4, offset = 0x4, fixed_abs, tag = 'smem constant byte address 0x4 - core index']
  #allocation1 [shape = 'u32[144,128]{1,0:T(1,128)}', space=vmem, size = 0x12000, scoped, tag = 'internal scratch']
  %s0 = inlined_call_operand.vmem [shape: f32[64,20], index: 0, kind: input, shape index: {}]
  %s1 = inlined_call_operand.vmem [shape: bf16[20,128], index: 1, kind: input, shape index: {}]
  %s2 = inlined_call_operand.vmem [shape: f32[1,128], index: 2, kind: input, shape index: {}]
  %s3 = inlined_call_operand.hbm [shape: bf16[8,128,128], index: 3, kind: input, shape index: {}]
  %s4 = inlined_call_operand.vmem [shape: f32[8,1,128], index: 4, kind: input, shape index: {}]
  %s5 = inlined_call_operand.vmem [shape: bf16[128,128], index: 5, kind: input, shape index: {}]
  %s6 = inlined_call_operand.vmem [shape: f32[1,128], index: 6, kind: input, shape index: {}]
  %s7 = inlined_call_operand.vmem [shape: f32[64,2], index: 7, kind: output, shape index: {}]
  %s8 = sld [smem:[#allocation0]]
  $region65: #{tpu_custom_call.1} parent=0
    _
  %s10 = ssub.s32 1, %s8
  %s11 = scalar_select 0, %s10, %s8
  $region1: #{tpu_custom_call.1} parent=0
    #allocation2 [shape = 'u8[262144]{0}', space=vmem, size = 0x40000, scoped, tag = 'input window, operand 3, single buffered']
    #allocation3 [shape = 's32[2]{0}', space=sflag, size = 0x8, scoped, tag = 'scoped memory for tpu_custom_call.1']
    %12 = vsyncpa [#allocation3], 0
    loop: start=0, step=1, limit=4
    $region2: #{tpu_custom_call.1} parent=1 // loop_pre_header
      _
    $region3: #{tpu_custom_call.1} parent=1 // loop_header
      %s14 = sphi 0, %s18
      %p15 = scmp.ge.s32.totalorder %s14, 4
      %s24 = sphi 0, %s26
      %s27 = sphi 0, %s24
      %s28 = sphi 0, %s27
      %s44 = sphi 0, %s28
      %s48 = sphi 0, %s48
      %s50 = sphi 0, %s48
      %s51 = sphi 0, %s50
      %s65 = sphi 0, %s51
      %s69 = sphi 0, %s69
      %s71 = sphi 0, %s69
      %s72 = sphi 0, %s71
      %s86 = sphi 0, %s72
      %s90 = sphi 0, %s90
      %s92 = sphi 0, %s90
      %s93 = sphi 0, %s92
      %s107 = sphi 0, %s93
      %s111 = sphi 0, %s111
      %s113 = sphi 0, %s111
      %s114 = sphi 0, %s113
      %s128 = sphi 0, %s114
      %s132 = sphi 0, %s132
      %s134 = sphi 0, %s132
      %s135 = sphi 0, %s134
      %s149 = sphi 0, %s135
      %s153 = sphi 0, %s153
      %s155 = sphi 0, %s153
      %s156 = sphi 0, %s155
      %s170 = sphi 0, %s156
      %s176 = sphi 0, %s178
      %s179 = sphi 0, %s176
      %s180 = sphi 0, %s179
      %s196 = sphi 0, %s180
    $region4: #{tpu_custom_call.1} parent=1 // loop_header_branch
      %17 = sbr.rel (%p15) target = $region8
    $region5: #{tpu_custom_call.1} parent=1 // loop_body
      %s19 = ssub.s32 %s14, 1
      %s20 = ssub.s32 %s14, 2
      %s21 = sadd.s32 %s14, 1
      %s22 = ssub.s32 %s14, %s21
      %p23 = scmp.eq.s32.totalorder %s22, 0
      %s25 = sadd.s32 %s24, 1
      %s26 = scalar_select %p23, %s24, %s25
      %p29 = pneg %p23
      %p30 = scmp.eq.s32.totalorder %s14, 1
      %p31 = por %p29, %p30
      %p32 = scmp.ne.s32.totalorder %s24, %s27
      %p33 = scmp.eq.s32.totalorder %s14, 0
      %p34 = por %p32, %p33
      %p35 = scmp.ne.s32.totalorder %s24, %s27
      %p36 = scmp.eq.s32.totalorder %s19, 1
      %p37 = por %p35, %p36
      %p38 = scmp.ne.s32.totalorder %s27, %s28
      %p39 = scmp.eq.s32.totalorder %s19, 0
      %p40 = por %p38, %p39
      %p41 = scmp.ne.s32.totalorder %s27, %s28
      %p42 = scmp.eq.s32.totalorder %s20, 1
      %p43 = por %p41, %p42
      %p45 = scmp.ne.s32.totalorder %s28, %s44
      %p46 = scmp.eq.s32.totalorder %s20, 0
      %p47 = por %p45, %p46
      %s49 = sadd.s32 %s48, 1
      %p52 = scmp.eq.s32.totalorder %s14, 1
      %p53 = scmp.ne.s32.totalorder %s48, %s50
      %p54 = scmp.eq.s32.totalorder %s14, 0
      %p55 = por %p53, %p54
      %p56 = scmp.ne.s32.totalorder %s48, %s50
      %p57 = scmp.eq.s32.totalorder %s19, 1
      %p58 = por %p56, %p57
      %p59 = scmp.ne.s32.totalorder %s50, %s51
      %p60 = scmp.eq.s32.totalorder %s19, 0
      %p61 = por %p59, %p60
      %p62 = scmp.ne.s32.totalorder %s50, %s51
      %p63 = scmp.eq.s32.totalorder %s20, 1
      %p64 = por %p62, %p63
      %p66 = scmp.ne.s32.totalorder %s51, %s65
      %p67 = scmp.eq.s32.totalorder %s20, 0
      %p68 = por %p66, %p67
      %s70 = sadd.s32 %s69, 1
      %p73 = scmp.eq.s32.totalorder %s14, 1
      %p74 = scmp.ne.s32.totalorder %s69, %s71
      %p75 = scmp.eq.s32.totalorder %s14, 0
      %p76 = por %p74, %p75
      %p77 = scmp.ne.s32.totalorder %s69, %s71
      %p78 = scmp.eq.s32.totalorder %s19, 1
      %p79 = por %p77, %p78
      %p80 = scmp.ne.s32.totalorder %s71, %s72
      %p81 = scmp.eq.s32.totalorder %s19, 0
      %p82 = por %p80, %p81
      %p83 = scmp.ne.s32.totalorder %s71, %s72
      %p84 = scmp.eq.s32.totalorder %s20, 1
      %p85 = por %p83, %p84
      %p87 = scmp.ne.s32.totalorder %s72, %s86
      %p88 = scmp.eq.s32.totalorder %s20, 0
      %p89 = por %p87, %p88
      %s91 = sadd.s32 %s90, 1
      %p94 = scmp.eq.s32.totalorder %s14, 1
      %p95 = scmp.ne.s32.totalorder %s90, %s92
      %p96 = scmp.eq.s32.totalorder %s14, 0
      %p97 = por %p95, %p96
      %p98 = scmp.ne.s32.totalorder %s90, %s92
      %p99 = scmp.eq.s32.totalorder %s19, 1
      %p100 = por %p98, %p99
      %p101 = scmp.ne.s32.totalorder %s92, %s93
      %p102 = scmp.eq.s32.totalorder %s19, 0
      %p103 = por %p101, %p102
      %p104 = scmp.ne.s32.totalorder %s92, %s93
      %p105 = scmp.eq.s32.totalorder %s20, 1
      %p106 = por %p104, %p105
      %p108 = scmp.ne.s32.totalorder %s93, %s107
      %p109 = scmp.eq.s32.totalorder %s20, 0
      %p110 = por %p108, %p109
      %s112 = sadd.s32 %s111, 1
      %p115 = scmp.eq.s32.totalorder %s14, 1
      %p116 = scmp.ne.s32.totalorder %s111, %s113
      %p117 = scmp.eq.s32.totalorder %s14, 0
      %p118 = por %p116, %p117
      %p119 = scmp.ne.s32.totalorder %s111, %s113
      %p120 = scmp.eq.s32.totalorder %s19, 1
      %p121 = por %p119, %p120
      %p122 = scmp.ne.s32.totalorder %s113, %s114
      %p123 = scmp.eq.s32.totalorder %s19, 0
      %p124 = por %p122, %p123
      %p125 = scmp.ne.s32.totalorder %s113, %s114
      %p126 = scmp.eq.s32.totalorder %s20, 1
      %p127 = por %p125, %p126
      %p129 = scmp.ne.s32.totalorder %s114, %s128
      %p130 = scmp.eq.s32.totalorder %s20, 0
      %p131 = por %p129, %p130
      %s133 = sadd.s32 %s132, 1
      %p136 = scmp.eq.s32.totalorder %s14, 1
      %p137 = scmp.ne.s32.totalorder %s132, %s134
      %p138 = scmp.eq.s32.totalorder %s14, 0
      %p139 = por %p137, %p138
      %p140 = scmp.ne.s32.totalorder %s132, %s134
      %p141 = scmp.eq.s32.totalorder %s19, 1
      %p142 = por %p140, %p141
      %p143 = scmp.ne.s32.totalorder %s134, %s135
      %p144 = scmp.eq.s32.totalorder %s19, 0
      %p145 = por %p143, %p144
      %p146 = scmp.ne.s32.totalorder %s134, %s135
      %p147 = scmp.eq.s32.totalorder %s20, 1
      %p148 = por %p146, %p147
      %p150 = scmp.ne.s32.totalorder %s135, %s149
      %p151 = scmp.eq.s32.totalorder %s20, 0
      %p152 = por %p150, %p151
      %s154 = sadd.s32 %s153, 1
      %p157 = scmp.eq.s32.totalorder %s14, 1
      %p158 = scmp.ne.s32.totalorder %s153, %s155
      %p159 = scmp.eq.s32.totalorder %s14, 0
      %p160 = por %p158, %p159
      %p161 = scmp.ne.s32.totalorder %s153, %s155
      %p162 = scmp.eq.s32.totalorder %s19, 1
      %p163 = por %p161, %p162
      %p164 = scmp.ne.s32.totalorder %s155, %s156
      %p165 = scmp.eq.s32.totalorder %s19, 0
      %p166 = por %p164, %p165
      %p167 = scmp.ne.s32.totalorder %s155, %s156
      %p168 = scmp.eq.s32.totalorder %s20, 1
      %p169 = por %p167, %p168
      %p171 = scmp.ne.s32.totalorder %s156, %s170
      %p172 = scmp.eq.s32.totalorder %s20, 0
      %p173 = por %p171, %p172
      %s174 = ssub.s32 %s14, %s21
      %p175 = scmp.eq.s32.totalorder %s174, 0
      %s177 = sadd.s32 %s176, 1
      %s178 = scalar_select %p175, %s176, %s177
      %p181 = pneg %p175
      %p182 = scmp.eq.s32.totalorder %s14, 1
      %p183 = por %p181, %p182
      %p184 = scmp.ne.s32.totalorder %s176, %s179
      %p185 = scmp.eq.s32.totalorder %s14, 0
      %p186 = por %p184, %p185
      %p187 = scmp.ne.s32.totalorder %s176, %s179
      %p188 = scmp.eq.s32.totalorder %s19, 1
      %p189 = por %p187, %p188
      %p190 = scmp.ne.s32.totalorder %s179, %s180
      %p191 = scmp.eq.s32.totalorder %s19, 0
      %p192 = por %p190, %p191
      %p193 = scmp.ne.s32.totalorder %s179, %s180
      %p194 = scmp.eq.s32.totalorder %s20, 1
      %p195 = por %p193, %p194
      %p197 = scmp.ne.s32.totalorder %s180, %s196
      %p198 = scmp.eq.s32.totalorder %s20, 0
      %p199 = por %p197, %p198
      %p200 = scmp.le.s32.totalorder 1, %s14
      %p201 = scmp.lt.s32.totalorder %s14, 3
      %p202 = pnand %p200, %p201
      %p203 = pneg %p202
      // Predicated region
      $region9: #{tpu_custom_call.1} parent=5 // pred_check
        _
      $region10: #{tpu_custom_call.1} parent=5 // pred_check_branch
        %205 = sbr.rel (%p202) target = $region12
      $region11: #{tpu_custom_call.1} parent=5 // pred_region
        %s206 = ssub.s32 %s14, 1
        // Predicated region
        $region13: #{tpu_custom_call.1} parent=11 // pred_check
          %p207 = pneg %p61
        $region14: #{tpu_custom_call.1} parent=11 // pred_check_branch
          %209 = sbr.rel (%p207) target = $region16
        $region15: #{tpu_custom_call.1} parent=11 // pred_region
          _
        $region16: #{tpu_custom_call.1} parent=11 // pred_fallthru
          _
        // Predicated region
        $region17: #{tpu_custom_call.1} parent=11 // pred_check
          %p210 = pneg %p82
        $region18: #{tpu_custom_call.1} parent=11 // pred_check_branch
          %212 = sbr.rel (%p210) target = $region20
        $region19: #{tpu_custom_call.1} parent=11 // pred_region
          _
        $region20: #{tpu_custom_call.1} parent=11 // pred_fallthru
          _
        // Predicated region
        $region21: #{tpu_custom_call.1} parent=11 // pred_check
          %p213 = pneg %p103
        $region22: #{tpu_custom_call.1} parent=11 // pred_check_branch
          %215 = sbr.rel (%p213) target = $region24
        $region23: #{tpu_custom_call.1} parent=11 // pred_region
          %s217 = ssub.s32 8192, 8192
          %218 = vsyncadd [#allocation3], %s217
          %s219 = sshll.u32 [#allocation2], 4
          %s220 = int_to_ptr.vmem [resolvable:$true] %s219
          %225 = dma.hbm_to_vmem [thread:$0]  %s3, 8192, %s220, [#allocation3], 64, 64, 4
        $region24: #{tpu_custom_call.1} parent=11 // pred_fallthru
          _
        // Predicated region
        $region25: #{tpu_custom_call.1} parent=11 // pred_check
          %p226 = pneg %p124
        $region26: #{tpu_custom_call.1} parent=11 // pred_check_branch
          %228 = sbr.rel (%p226) target = $region28
        $region27: #{tpu_custom_call.1} parent=11 // pred_region
          _
        $region28: #{tpu_custom_call.1} parent=11 // pred_fallthru
          _
        // Predicated region
        $region29: #{tpu_custom_call.1} parent=11 // pred_check
          %p229 = pneg %p145
        $region30: #{tpu_custom_call.1} parent=11 // pred_check_branch
          %231 = sbr.rel (%p229) target = $region32
        $region31: #{tpu_custom_call.1} parent=11 // pred_region
          _
        $region32: #{tpu_custom_call.1} parent=11 // pred_fallthru
          _
        // Predicated region
        $region33: #{tpu_custom_call.1} parent=11 // pred_check
          %p232 = pneg %p166
        $region34: #{tpu_custom_call.1} parent=11 // pred_check_branch
          %234 = sbr.rel (%p232) target = $region36
        $region35: #{tpu_custom_call.1} parent=11 // pred_region
          _
        $region36: #{tpu_custom_call.1} parent=11 // pred_fallthru
          _
      $region12: #{tpu_custom_call.1} parent=5 // pred_fallthru
        _
      %p235 = scmp.lt.s32.totalorder %s14, 2
      // Predicated region
      $region37: #{tpu_custom_call.1} parent=5 // pred_check
        %p236 = pneg %p235
      $region38: #{tpu_custom_call.1} parent=5 // pred_check_branch
        %238 = sbr.rel (%p236) target = $region40
      $region39: #{tpu_custom_call.1} parent=5 // pred_region
        // Predicated region
        $region41: #{tpu_custom_call.1} parent=39 // pred_check
          %p239 = pneg %p34
        $region42: #{tpu_custom_call.1} parent=39 // pred_check_branch
          %241 = sbr.rel (%p239) target = $region44
        $region43: #{tpu_custom_call.1} parent=39 // pred_region
          %s242 = smul.u32 4, %s14
          %p243 = scmp.lt.s32.totalorder %s242, 7
          %s244 = scalar_select %p243, %s242, 7
          %s245 = smul.addr %s244, 8
          %s246 = scalar_lea.vmem %s0, %s245
          %s247 = smul.u32 4, %s14
        $region44: #{tpu_custom_call.1} parent=39 // pred_fallthru
          _
      $region40: #{tpu_custom_call.1} parent=5 // pred_fallthru
        _
      %p248 = scmp.le.s32.totalorder 1, %s14
      %p249 = scmp.lt.s32.totalorder %s14, 3
      %p250 = pnand %p248, %p249
      %p251 = pneg %p250
      // Predicated region
      $region45: #{tpu_custom_call.1} parent=5 // pred_check
        _
      $region46: #{tpu_custom_call.1} parent=5 // pred_check_branch
        %253 = sbr.rel (%p250) target = $region48
      $region47: #{tpu_custom_call.1} parent=5 // pred_region
        %s254 = ssub.s32 %s14, 1
        // Predicated region
        $region49: #{tpu_custom_call.1} parent=47 // pred_check
          %p255 = pneg %p103
        $region50: #{tpu_custom_call.1} parent=47 // pred_check_branch
          %257 = sbr.rel (%p255) target = $region52
        $region51: #{tpu_custom_call.1} parent=47 // pred_region
          %258 = dma.done [#allocation3], 8192
        $region52: #{tpu_custom_call.1} parent=47 // pred_fallthru
          _
        %s259 = smul.u32 4, %s19
        %p260 = scmp.lt.s32.totalorder %s259, 7
        %s261 = scalar_select %p260, %s259, 7
        %s262 = smul.addr %s261, 8
        %s263 = scalar_lea.vmem %s0, %s262
        %p264 = pneg %p40
        %p265 = pneg %p37
        %p266 = pneg %p61
        %p267 = pneg %p58
        %p268 = pneg %p82
        %p269 = pneg %p79
        %p270 = pneg %p103
        %p271 = pneg %p100
        %p272 = pneg %p124
        %p273 = pneg %p121
        %p274 = pneg %p145
        %p275 = pneg %p142
        %p276 = pneg %p166
        %p277 = pneg %p163
        %p278 = pneg %p192
        %p279 = pneg %p189
        %s280 = smul.u32 4, %s19
        %p281 = scmp.lt.s32.totalorder %s280, 7
        %s282 = scalar_select %p281, %s280, 7
        %s283 = smul.addr %s282, 8
        %s284 = scalar_lea.vmem %s7, %s283
        %s285 = smul.u32 4, %s19
        %p286 = scmp.lt.s32.totalorder %s285, 7
        %s287 = scalar_select %p286, %s285, 7
        %s288 = smul.addr %s287, 8
        %s289 = scalar_lea.vmem %s0, %s288
        %s290 = smul.u32 4, %s19
        %s291 = smul.u32 4, %s19
        %p292 = scmp.lt.s32.totalorder %s291, 7
        %s293 = scalar_select %p292, %s291, 7
        %s294 = smul.addr %s293, 8
        %s295 = scalar_lea.vmem %s7, %s294
        %s296 = smul.u32 4, %s19
        %v298 = vld [vmem:[%s289] sm:$0xff]
        %v299 = vld [vmem:[%s289 + $0x8] sm:$0xff]
        %v300 = vld [vmem:[%s289 + $0x10] sm:$0xff]
        %v301 = vld [vmem:[%s289 + $0x18] sm:$0xff]
        %v302 = vpack.c.bf16 %v299, %v298
        %v303 = vpack.c.bf16 %v301, %v300
        %v304 = vld [vmem:[%s1] sm:$0xf]
        %v305 = vld [vmem:[%s1 + $0x4] sm:$0xf]
        %v306 = vld [vmem:[%s1 + $0x8] sm:$0x3]
        %v307 = vld [vmem:[%s2] sm:$0x1]
        %v309 = vlaneseq
        %v310 = vshrl.u32 %v309, 7
        %v311 = vsub.s32 0, %v310
        %v312 = vrot.slane %v307, %v311
        %v317 = vunpack.c.l.b16 %v304
        %v318 = vunpack.c.l.b16 %v305
        %v319 = vunpack.c.l.b16 %v306
        %v320 = vpack.c.b16 %v318, %v317
        %v321 = vpack.c.b16 %v319, %v319
        %vm323 = vcmask 162816
        %v325 = vsel %vm323, %v302, 0
        %v328 = vsel %vm323, %v303, 0
        %vm330 = vcmask 1041408
        %v332 = vsel %vm330, %v321, 0
        %334 = vmatprep.subr.bf16.mxu0 0
        %335 = vmatpush1.bf16.msra.mxu0 %v320
        %336 = vmatprep.subr.bf16.mxu0 0
        %337 = vmatpush1.bf16.msra.mxu0 %v332
        %338 = vmatprep.subr.bf16.mxu0 0
        %339 = vmatpush1.bf16.msra.mxu0 0
        %340 = vmatprep.subr.bf16.mxu0 0
        %341 = vmatpush1.bf16.msra.mxu0 0
        %342 = vmatprep.subr.bf16.mxu0 0
        %343 = vmatpush1.bf16.msra.mxu0 0
        %344 = vmatprep.subr.bf16.mxu0 0
        %345 = vmatpush1.bf16.msra.mxu0 0
        %346 = vmatprep.subr.bf16.mxu0 0
        %347 = vmatpush1.bf16.msra.mxu0 0
        %348 = vmatprep.subr.bf16.mxu0 0
        %349 = vmatpush1.bf16.msra.mxu0 0
        %350 = vmatprep.subr.bf16.mxu0 0
        %351 = vmatpush1.bf16.msra.mxu0 0
        %352 = vmatprep.subr.bf16.mxu0 0
        %353 = vmatpush1.bf16.msra.mxu0 0
        %354 = vmatprep.subr.bf16.mxu0 0
        %355 = vmatpush1.bf16.msra.mxu0 0
        %356 = vmatprep.subr.bf16.mxu0 0
        %357 = vmatpush1.bf16.msra.mxu0 0
        %358 = vmatprep.subr.bf16.mxu0 0
        %359 = vmatpush1.bf16.msra.mxu0 0
        %360 = vmatprep.subr.bf16.mxu0 0
        %361 = vmatpush1.bf16.msra.mxu0 0
        %362 = vmatprep.subr.bf16.mxu0 0
        %363 = vmatpush1.bf16.msra.mxu0 0
        %364 = vmatprep.subr.bf16.mxu0 0
        %365 = vmatpush1.bf16.msra.mxu0 0
        %366 = vmatprep.mubr.bf16.mxu0 0
        %367 = vmatmul.mubr.bf16.gmra.mrb[0].mxu0 %v325
        %v368 = vpop.f32.mrb[0].mxu0
        %v369 = vadd.f32 %v312, %v368
        %v370 = vpop.f32.mrb[0].mxu0
        %v371 = vpop.f32.mrb[0].mxu0
        %v372 = vadd.f32 %v312, %v371
        %v373 = vpop.f32.mrb[0].mxu0
        %374 = vmatprep.mubr.bf16.mxu0 0
        %375 = vmatmul.mubr.bf16.gmra.mrb[0].mxu0 %v328
        %v376 = vpop.f32.mrb[0].mxu0
        %v377 = vadd.f32 %v312, %v376
        %v378 = vpop.f32.mrb[0].mxu0
        %v379 = vpop.f32.mrb[0].mxu0
        %v380 = vadd.f32 %v312, %v379
        %v381 = vpop.f32.mrb[0].mxu0
        %382 = vdwg.mxu0
        %v383 = vpack.c.bf16 %v372, %v369
        %v384 = vpack.c.bf16 %v380, %v377
        %v385 = vld [vmem:[#allocation2] sm:$0xf]
        %v386 = vld [vmem:[#allocation2 + $0x4] sm:$0xf]
        %v387 = vld [vmem:[#allocation2 + $0x8] sm:$0xf]
        %v388 = vld [vmem:[#allocation2 + $0xc] sm:$0xf]
        %v389 = vld [vmem:[#allocation2 + $0x10] sm:$0xf]
        %v390 = vld [vmem:[#allocation2 + $0x14] sm:$0xf]
        %v391 = vld [vmem:[#allocation2 + $0x18] sm:$0xf]
        %v392 = vld [vmem:[#allocation2 + $0x1c] sm:$0xf]
        %v393 = vld [vmem:[#allocation2 + $0x20] sm:$0xf]
        %v394 = vld [vmem:[#allocation2 + $0x24] sm:$0xf]
        %v395 = vld [vmem:[#allocation2 + $0x28] sm:$0xf]
        %v396 = vld [vmem:[#allocation2 + $0x2c] sm:$0xf]
        %v397 = vld [vmem:[#allocation2 + $0x30] sm:$0xf]
        %v398 = vld [vmem:[#allocation2 + $0x34] sm:$0xf]
        %v399 = vld [vmem:[#allocation2 + $0x38] sm:$0xf]
        %v400 = vld [vmem:[#allocation2 + $0x3c] sm:$0xf]
        %v401 = vld [vmem:[%s4] sm:$0x1]
        %v403 = vlaneseq
        %v404 = vshrl.u32 %v403, 7
        %v405 = vsub.s32 0, %v404
        %v406 = vrot.slane %v401, %v405
        %v424 = vunpack.c.l.b16 %v385
        %v425 = vunpack.c.l.b16 %v386
        %v426 = vunpack.c.l.b16 %v387
        %v427 = vunpack.c.l.b16 %v388
        %v428 = vunpack.c.l.b16 %v389
        %v429 = vunpack.c.l.b16 %v390
        %v430 = vunpack.c.l.b16 %v391
        %v431 = vunpack.c.l.b16 %v392
        %v432 = vunpack.c.l.b16 %v393
        %v433 = vunpack.c.l.b16 %v394
        %v434 = vunpack.c.l.b16 %v395
        %v435 = vunpack.c.l.b16 %v396
        %v436 = vunpack.c.l.b16 %v397
        %v437 = vunpack.c.l.b16 %v398
        %v438 = vunpack.c.l.b16 %v399
        %v439 = vunpack.c.l.b16 %v400
        %v440 = vpack.c.b16 %v425, %v424
        %v441 = vpack.c.b16 %v427, %v426
        %v442 = vpack.c.b16 %v429, %v428
        %v443 = vpack.c.b16 %v431, %v430
        %v444 = vpack.c.b16 %v433, %v432
        %v445 = vpack.c.b16 %v435, %v434
        %v446 = vpack.c.b16 %v437, %v436
        %v447 = vpack.c.b16 %v439, %v438
        %456 = vmatprep.subr.bf16.mxu0 0
        %457 = vmatpush1.bf16.msra.mxu0 %v440
        %458 = vmatprep.subr.bf16.mxu0 0
        %459 = vmatpush1.bf16.msra.mxu0 %v441
        %460 = vmatprep.subr.bf16.mxu0 0
        %461 = vmatpush1.bf16.msra.mxu0 %v442
        %462 = vmatprep.subr.bf16.mxu0 0
        %463 = vmatpush1.bf16.msra.mxu0 %v443
        %464 = vmatprep.subr.bf16.mxu0 0
        %465 = vmatpush1.bf16.msra.mxu0 %v444
        %466 = vmatprep.subr.bf16.mxu0 0
        %467 = vmatpush1.bf16.msra.mxu0 %v445
        %468 = vmatprep.subr.bf16.mxu0 0
        %469 = vmatpush1.bf16.msra.mxu0 %v446
        %470 = vmatprep.subr.bf16.mxu0 0
        %471 = vmatpush1.bf16.msra.mxu0 %v447
        %472 = vmatprep.subr.bf16.mxu0 0
        %473 = vmatpush1.bf16.msra.mxu0 0
        %474 = vmatprep.subr.bf16.mxu0 0
        %475 = vmatpush1.bf16.msra.mxu0 0
        %476 = vmatprep.subr.bf16.mxu0 0
        %477 = vmatpush1.bf16.msra.mxu0 0
        %478 = vmatprep.subr.bf16.mxu0 0
        %479 = vmatpush1.bf16.msra.mxu0 0
        %480 = vmatprep.subr.bf16.mxu0 0
        %481 = vmatpush1.bf16.msra.mxu0 0
        %482 = vmatprep.subr.bf16.mxu0 0
        %483 = vmatpush1.bf16.msra.mxu0 0
        %484 = vmatprep.subr.bf16.mxu0 0
        %485 = vmatpush1.bf16.msra.mxu0 0
        %486 = vmatprep.subr.bf16.mxu0 0
        %487 = vmatpush1.bf16.msra.mxu0 0
        %488 = vmatprep.mubr.bf16.mxu0 0
        %489 = vmatmul.mubr.bf16.gmra.mrb[0].mxu0 %v383
        %v490 = vpop.f32.mrb[0].mxu0
        %v491 = vadd.f32 %v406, %v490
        %v492 = vpop.f32.mrb[0].mxu0
        %v493 = vpop.f32.mrb[0].mxu0
        %v494 = vadd.f32 %v406, %v493
        %v495 = vpop.f32.mrb[0].mxu0
        %496 = vmatprep.mubr.bf16.mxu0 0
        %497 = vmatmul.mubr.bf16.gmra.mrb[0].mxu0 %v384
        %v498 = vpop.f32.mrb[0].mxu0
        %v499 = vadd.f32 %v406, %v498
        %v500 = vpop.f32.mrb[0].mxu0
        %v501 = vpop.f32.mrb[0].mxu0
        %v502 = vadd.f32 %v406, %v501
        %v503 = vpop.f32.mrb[0].mxu0
        %504 = vdwg.mxu0
        %v505 = vmax.f32 %v491, 0.0
        %v506 = vmax.f32 %v494, 0.0
        %v507 = vmax.f32 %v499, 0.0
        %v508 = vmax.f32 %v502, 0.0
        %v509 = vpack.c.bf16 %v506, %v505
        %v510 = vpack.c.bf16 %v508, %v507
        %s511 = scalar_lea.vmem [#allocation2], 64
        %v512 = vld [vmem:[%s511] sm:$0xf]
        %v513 = vld [vmem:[%s511 + $0x4] sm:$0xf]
        %v514 = vld [vmem:[%s511 + $0x8] sm:$0xf]
        %v515 = vld [vmem:[%s511 + $0xc] sm:$0xf]
        %v516 = vld [vmem:[%s511 + $0x10] sm:$0xf]
        %v517 = vld [vmem:[%s511 + $0x14] sm:$0xf]
        %v518 = vld [vmem:[%s511 + $0x18] sm:$0xf]
        %v519 = vld [vmem:[%s511 + $0x1c] sm:$0xf]
        %v520 = vld [vmem:[%s511 + $0x20] sm:$0xf]
        %v521 = vld [vmem:[%s511 + $0x24] sm:$0xf]
        %v522 = vld [vmem:[%s511 + $0x28] sm:$0xf]
        %v523 = vld [vmem:[%s511 + $0x2c] sm:$0xf]
        %v524 = vld [vmem:[%s511 + $0x30] sm:$0xf]
        %v525 = vld [vmem:[%s511 + $0x34] sm:$0xf]
        %v526 = vld [vmem:[%s511 + $0x38] sm:$0xf]
        %v527 = vld [vmem:[%s511 + $0x3c] sm:$0xf]
        %s528 = scalar_lea.vmem %s4, 1
        %v529 = vld [vmem:[%s528] sm:$0x1]
        %v531 = vlaneseq
        %v532 = vshrl.u32 %v531, 7
        %v533 = vsub.s32 0, %v532
        %v534 = vrot.slane %v529, %v533
        %v552 = vunpack.c.l.b16 %v512
        %v553 = vunpack.c.l.b16 %v513
        %v554 = vunpack.c.l.b16 %v514
        %v555 = vunpack.c.l.b16 %v515
        %v556 = vunpack.c.l.b16 %v516
        %v557 = vunpack.c.l.b16 %v517
        %v558 = vunpack.c.l.b16 %v518
        %v559 = vunpack.c.l.b16 %v519
        %v560 = vunpack.c.l.b16 %v520
        %v561 = vunpack.c.l.b16 %v521
        %v562 = vunpack.c.l.b16 %v522
        %v563 = vunpack.c.l.b16 %v523
        %v564 = vunpack.c.l.b16 %v524
        %v565 = vunpack.c.l.b16 %v525
        %v566 = vunpack.c.l.b16 %v526
        %v567 = vunpack.c.l.b16 %v527
        %v568 = vpack.c.b16 %v553, %v552
        %v569 = vpack.c.b16 %v555, %v554
        %v570 = vpack.c.b16 %v557, %v556
        %v571 = vpack.c.b16 %v559, %v558
        %v572 = vpack.c.b16 %v561, %v560
        %v573 = vpack.c.b16 %v563, %v562
        %v574 = vpack.c.b16 %v565, %v564
        %v575 = vpack.c.b16 %v567, %v566
        %584 = vmatprep.subr.bf16.mxu0 0
        %585 = vmatpush1.bf16.msra.mxu0 %v568
        %586 = vmatprep.subr.bf16.mxu0 0
        %587 = vmatpush1.bf16.msra.mxu0 %v569
        %588 = vmatprep.subr.bf16.mxu0 0
        %589 = vmatpush1.bf16.msra.mxu0 %v570
        %590 = vmatprep.subr.bf16.mxu0 0
        %591 = vmatpush1.bf16.msra.mxu0 %v571
        %592 = vmatprep.subr.bf16.mxu0 0
        %593 = vmatpush1.bf16.msra.mxu0 %v572
        %594 = vmatprep.subr.bf16.mxu0 0
        %595 = vmatpush1.bf16.msra.mxu0 %v573
        %596 = vmatprep.subr.bf16.mxu0 0
        %597 = vmatpush1.bf16.msra.mxu0 %v574
        %598 = vmatprep.subr.bf16.mxu0 0
        %599 = vmatpush1.bf16.msra.mxu0 %v575
        %600 = vmatprep.subr.bf16.mxu0 0
        %601 = vmatpush1.bf16.msra.mxu0 0
        %602 = vmatprep.subr.bf16.mxu0 0
        %603 = vmatpush1.bf16.msra.mxu0 0
        %604 = vmatprep.subr.bf16.mxu0 0
        %605 = vmatpush1.bf16.msra.mxu0 0
        %606 = vmatprep.subr.bf16.mxu0 0
        %607 = vmatpush1.bf16.msra.mxu0 0
        %608 = vmatprep.subr.bf16.mxu0 0
        %609 = vmatpush1.bf16.msra.mxu0 0
        %610 = vmatprep.subr.bf16.mxu0 0
        %611 = vmatpush1.bf16.msra.mxu0 0
        %612 = vmatprep.subr.bf16.mxu0 0
        %613 = vmatpush1.bf16.msra.mxu0 0
        %614 = vmatprep.subr.bf16.mxu0 0
        %615 = vmatpush1.bf16.msra.mxu0 0
        %616 = vmatprep.mubr.bf16.mxu0 0
        %617 = vmatmul.mubr.bf16.gmra.mrb[0].mxu0 %v509
        %v618 = vpop.f32.mrb[0].mxu0
        %v619 = vadd.f32 %v534, %v618
        %v620 = vpop.f32.mrb[0].mxu0
        %v621 = vpop.f32.mrb[0].mxu0
        %v622 = vadd.f32 %v534, %v621
        %v623 = vpop.f32.mrb[0].mxu0
        %624 = vmatprep.mubr.bf16.mxu0 0
        %625 = vmatmul.mubr.bf16.gmra.mrb[0].mxu0 %v510
        %v626 = vpop.f32.mrb[0].mxu0
        %v627 = vadd.f32 %v534, %v626
        %v628 = vpop.f32.mrb[0].mxu0
        %v629 = vpop.f32.mrb[0].mxu0
        %v630 = vadd.f32 %v534, %v629
        %v631 = vpop.f32.mrb[0].mxu0
        %632 = vdwg.mxu0
        %v633 = vmax.f32 %v619, 0.0
        %v634 = vmax.f32 %v622, 0.0
        %v635 = vmax.f32 %v627, 0.0
        %v636 = vmax.f32 %v630, 0.0
        %v637 = vpack.c.bf16 %v634, %v633
        %v638 = vpack.c.bf16 %v636, %v635
        %s639 = scalar_lea.vmem [#allocation2], 128
        %v640 = vld [vmem:[%s639] sm:$0xf]
        %v641 = vld [vmem:[%s639 + $0x4] sm:$0xf]
        %v642 = vld [vmem:[%s639 + $0x8] sm:$0xf]
        %v643 = vld [vmem:[%s639 + $0xc] sm:$0xf]
        %v644 = vld [vmem:[%s639 + $0x10] sm:$0xf]
        %v645 = vld [vmem:[%s639 + $0x14] sm:$0xf]
        %v646 = vld [vmem:[%s639 + $0x18] sm:$0xf]
        %v647 = vld [vmem:[%s639 + $0x1c] sm:$0xf]
        %v648 = vld [vmem:[%s639 + $0x20] sm:$0xf]
        %v649 = vld [vmem:[%s639 + $0x24] sm:$0xf]
        %v650 = vld [vmem:[%s639 + $0x28] sm:$0xf]
        %v651 = vld [vmem:[%s639 + $0x2c] sm:$0xf]
        %v652 = vld [vmem:[%s639 + $0x30] sm:$0xf]
        %v653 = vld [vmem:[%s639 + $0x34] sm:$0xf]
        %v654 = vld [vmem:[%s639 + $0x38] sm:$0xf]
        %v655 = vld [vmem:[%s639 + $0x3c] sm:$0xf]
        %s656 = scalar_lea.vmem %s4, 2
        %v657 = vld [vmem:[%s656] sm:$0x1]
        %v659 = vlaneseq
        %v660 = vshrl.u32 %v659, 7
        %v661 = vsub.s32 0, %v660
        %v662 = vrot.slane %v657, %v661
        %v680 = vunpack.c.l.b16 %v640
        %v681 = vunpack.c.l.b16 %v641
        %v682 = vunpack.c.l.b16 %v642
        %v683 = vunpack.c.l.b16 %v643
        %v684 = vunpack.c.l.b16 %v644
        %v685 = vunpack.c.l.b16 %v645
        %v686 = vunpack.c.l.b16 %v646
        %v687 = vunpack.c.l.b16 %v647
        %v688 = vunpack.c.l.b16 %v648
        %v689 = vunpack.c.l.b16 %v649
        %v690 = vunpack.c.l.b16 %v650
        %v691 = vunpack.c.l.b16 %v651
        %v692 = vunpack.c.l.b16 %v652
        %v693 = vunpack.c.l.b16 %v653
        %v694 = vunpack.c.l.b16 %v654
        %v695 = vunpack.c.l.b16 %v655
        %v696 = vpack.c.b16 %v681, %v680
        %v697 = vpack.c.b16 %v683, %v682
        %v698 = vpack.c.b16 %v685, %v684
        %v699 = vpack.c.b16 %v687, %v686
        %v700 = vpack.c.b16 %v689, %v688
        %v701 = vpack.c.b16 %v691, %v690
        %v702 = vpack.c.b16 %v693, %v692
        %v703 = vpack.c.b16 %v695, %v694
        %712 = vmatprep.subr.bf16.mxu0 0
        %713 = vmatpush1.bf16.msra.mxu0 %v696
        %714 = vmatprep.subr.bf16.mxu0 0
        %715 = vmatpush1.bf16.msra.mxu0 %v697
        %716 = vmatprep.subr.bf16.mxu0 0
        %717 = vmatpush1.bf16.msra.mxu0 %v698
        %718 = vmatprep.subr.bf16.mxu0 0
        %719 = vmatpush1.bf16.msra.mxu0 %v699
        %720 = vmatprep.subr.bf16.mxu0 0
        %721 = vmatpush1.bf16.msra.mxu0 %v700
        %722 = vmatprep.subr.bf16.mxu0 0
        %723 = vmatpush1.bf16.msra.mxu0 %v701
        %724 = vmatprep.subr.bf16.mxu0 0
        %725 = vmatpush1.bf16.msra.mxu0 %v702
        %726 = vmatprep.subr.bf16.mxu0 0
        %727 = vmatpush1.bf16.msra.mxu0 %v703
        %728 = vmatprep.subr.bf16.mxu0 0
        %729 = vmatpush1.bf16.msra.mxu0 0
        %730 = vmatprep.subr.bf16.mxu0 0
        %731 = vmatpush1.bf16.msra.mxu0 0
        %732 = vmatprep.subr.bf16.mxu0 0
        %733 = vmatpush1.bf16.msra.mxu0 0
        %734 = vmatprep.subr.bf16.mxu0 0
        %735 = vmatpush1.bf16.msra.mxu0 0
        %736 = vmatprep.subr.bf16.mxu0 0
        %737 = vmatpush1.bf16.msra.mxu0 0
        %738 = vmatprep.subr.bf16.mxu0 0
        %739 = vmatpush1.bf16.msra.mxu0 0
        %740 = vmatprep.subr.bf16.mxu0 0
        %741 = vmatpush1.bf16.msra.mxu0 0
        %742 = vmatprep.subr.bf16.mxu0 0
        %743 = vmatpush1.bf16.msra.mxu0 0
        %744 = vmatprep.mubr.bf16.mxu0 0
        %745 = vmatmul.mubr.bf16.gmra.mrb[0].mxu0 %v637
        %v746 = vpop.f32.mrb[0].mxu0
        %v747 = vadd.f32 %v662, %v746
        %v748 = vpop.f32.mrb[0].mxu0
        %v749 = vpop.f32.mrb[0].mxu0
        %v750 = vadd.f32 %v662, %v749
        %v751 = vpop.f32.mrb[0].mxu0
        %752 = vmatprep.mubr.bf16.mxu0 0
        %753 = vmatmul.mubr.bf16.gmra.mrb[0].mxu0 %v638
        %v754 = vpop.f32.mrb[0].mxu0
        %v755 = vadd.f32 %v662, %v754
        %v756 = vpop.f32.mrb[0].mxu0
        %v757 = vpop.f32.mrb[0].mxu0
        %v758 = vadd.f32 %v662, %v757
        %v759 = vpop.f32.mrb[0].mxu0
        %760 = vdwg.mxu0
        %v761 = vmax.f32 %v747, 0.0
        %v762 = vmax.f32 %v750, 0.0
        %v763 = vmax.f32 %v755, 0.0
        %v764 = vmax.f32 %v758, 0.0
        %v765 = vpack.c.bf16 %v762, %v761
        %v766 = vpack.c.bf16 %v764, %v763
        %s767 = scalar_lea.vmem [#allocation2], 192
        %v768 = vld [vmem:[%s767] sm:$0xf]
        %v769 = vld [vmem:[%s767 + $0x4] sm:$0xf]
        %v770 = vld [vmem:[%s767 + $0x8] sm:$0xf]
        %v771 = vld [vmem:[%s767 + $0xc] sm:$0xf]
        %v772 = vld [vmem:[%s767 + $0x10] sm:$0xf]
        %v773 = vld [vmem:[%s767 + $0x14] sm:$0xf]
        %v774 = vld [vmem:[%s767 + $0x18] sm:$0xf]
        %v775 = vld [vmem:[%s767 + $0x1c] sm:$0xf]
        %v776 = vld [vmem:[%s767 + $0x20] sm:$0xf]
        %v777 = vld [vmem:[%s767 + $0x24] sm:$0xf]
        %v778 = vld [vmem:[%s767 + $0x28] sm:$0xf]
        %v779 = vld [vmem:[%s767 + $0x2c] sm:$0xf]
        %v780 = vld [vmem:[%s767 + $0x30] sm:$0xf]
        %v781 = vld [vmem:[%s767 + $0x34] sm:$0xf]
        %v782 = vld [vmem:[%s767 + $0x38] sm:$0xf]
        %v783 = vld [vmem:[%s767 + $0x3c] sm:$0xf]
        %s784 = scalar_lea.vmem %s4, 3
        %v785 = vld [vmem:[%s784] sm:$0x1]
        %v787 = vlaneseq
        %v788 = vshrl.u32 %v787, 7
        %v789 = vsub.s32 0, %v788
        %v790 = vrot.slane %v785, %v789
        %v808 = vunpack.c.l.b16 %v768
        %v809 = vunpack.c.l.b16 %v769
        %v810 = vunpack.c.l.b16 %v770
        %v811 = vunpack.c.l.b16 %v771
        %v812 = vunpack.c.l.b16 %v772
        %v813 = vunpack.c.l.b16 %v773
        %v814 = vunpack.c.l.b16 %v774
        %v815 = vunpack.c.l.b16 %v775
        %v816 = vunpack.c.l.b16 %v776
        %v817 = vunpack.c.l.b16 %v777
        %v818 = vunpack.c.l.b16 %v778
        %v819 = vunpack.c.l.b16 %v779
        %v820 = vunpack.c.l.b16 %v780
        %v821 = vunpack.c.l.b16 %v781
        %v822 = vunpack.c.l.b16 %v782
        %v823 = vunpack.c.l.b16 %v783
        %v824 = vpack.c.b16 %v809, %v808
        %v825 = vpack.c.b16 %v811, %v810
        %v826 = vpack.c.b16 %v813, %v812
        %v827 = vpack.c.b16 %v815, %v814
        %v828 = vpack.c.b16 %v817, %v816
        %v829 = vpack.c.b16 %v819, %v818
        %v830 = vpack.c.b16 %v821, %v820
        %v831 = vpack.c.b16 %v823, %v822
        %840 = vmatprep.subr.bf16.mxu0 0
        %841 = vmatpush1.bf16.msra.mxu0 %v824
        %842 = vmatprep.subr.bf16.mxu0 0
        %843 = vmatpush1.bf16.msra.mxu0 %v825
        %844 = vmatprep.subr.bf16.mxu0 0
        %845 = vmatpush1.bf16.msra.mxu0 %v826
        %846 = vmatprep.subr.bf16.mxu0 0
        %847 = vmatpush1.bf16.msra.mxu0 %v827
        %848 = vmatprep.subr.bf16.mxu0 0
        %849 = vmatpush1.bf16.msra.mxu0 %v828
        %850 = vmatprep.subr.bf16.mxu0 0
        %851 = vmatpush1.bf16.msra.mxu0 %v829
        %852 = vmatprep.subr.bf16.mxu0 0
        %853 = vmatpush1.bf16.msra.mxu0 %v830
        %854 = vmatprep.subr.bf16.mxu0 0
        %855 = vmatpush1.bf16.msra.mxu0 %v831
        %856 = vmatprep.subr.bf16.mxu0 0
        %857 = vmatpush1.bf16.msra.mxu0 0
        %858 = vmatprep.subr.bf16.mxu0 0
        %859 = vmatpush1.bf16.msra.mxu0 0
        %860 = vmatprep.subr.bf16.mxu0 0
        %861 = vmatpush1.bf16.msra.mxu0 0
        %862 = vmatprep.subr.bf16.mxu0 0
        %863 = vmatpush1.bf16.msra.mxu0 0
        %864 = vmatprep.subr.bf16.mxu0 0
        %865 = vmatpush1.bf16.msra.mxu0 0
        %866 = vmatprep.subr.bf16.mxu0 0
        %867 = vmatpush1.bf16.msra.mxu0 0
        %868 = vmatprep.subr.bf16.mxu0 0
        %869 = vmatpush1.bf16.msra.mxu0 0
        %870 = vmatprep.subr.bf16.mxu0 0
        %871 = vmatpush1.bf16.msra.mxu0 0
        %872 = vmatprep.mubr.bf16.mxu0 0
        %873 = vmatmul.mubr.bf16.gmra.mrb[0].mxu0 %v765
        %v874 = vpop.f32.mrb[0].mxu0
        %v875 = vadd.f32 %v790, %v874
        %v876 = vpop.f32.mrb[0].mxu0
        %v877 = vpop.f32.mrb[0].mxu0
        %v878 = vadd.f32 %v790, %v877
        %v879 = vpop.f32.mrb[0].mxu0
        %880 = vmatprep.mubr.bf16.mxu0 0
        %881 = vmatmul.mubr.bf16.gmra.mrb[0].mxu0 %v766
        %v882 = vpop.f32.mrb[0].mxu0
        %v883 = vadd.f32 %v790, %v882
        %v884 = vpop.f32.mrb[0].mxu0
        %v885 = vpop.f32.mrb[0].mxu0
        %v886 = vadd.f32 %v790, %v885
        %v887 = vpop.f32.mrb[0].mxu0
        %888 = vdwg.mxu0
        %v889 = vmax.f32 %v875, 0.0
        %v890 = vmax.f32 %v878, 0.0
        %v891 = vmax.f32 %v883, 0.0
        %v892 = vmax.f32 %v886, 0.0
        %v893 = vpack.c.bf16 %v890, %v889
        %v894 = vpack.c.bf16 %v892, %v891
        %s895 = scalar_lea.vmem [#allocation2], 256
        %v896 = vld [vmem:[%s895] sm:$0xf]
        %v897 = vld [vmem:[%s895 + $0x4] sm:$0xf]
        %v898 = vld [vmem:[%s895 + $0x8] sm:$0xf]
        %v899 = vld [vmem:[%s895 + $0xc] sm:$0xf]
        %v900 = vld [vmem:[%s895 + $0x10] sm:$0xf]
        %v901 = vld [vmem:[%s895 + $0x14] sm:$0xf]
        %v902 = vld [vmem:[%s895 + $0x18] sm:$0xf]
        %v903 = vld [vmem:[%s895 + $0x1c] sm:$0xf]
        %v904 = vld [vmem:[%s895 + $0x20] sm:$0xf]
        %v905 = vld [vmem:[%s895 + $0x24] sm:$0xf]
        %v906 = vld [vmem:[%s895 + $0x28] sm:$0xf]
        %v907 = vld [vmem:[%s895 + $0x2c] sm:$0xf]
        %v908 = vld [vmem:[%s895 + $0x30] sm:$0xf]
        %v909 = vld [vmem:[%s895 + $0x34] sm:$0xf]
        %v910 = vld [vmem:[%s895 + $0x38] sm:$0xf]
        %v911 = vld [vmem:[%s895 + $0x3c] sm:$0xf]
        %s912 = scalar_lea.vmem %s4, 4
        %v913 = vld [vmem:[%s912] sm:$0x1]
        %v915 = vlaneseq
        %v916 = vshrl.u32 %v915, 7
        %v917 = vsub.s32 0, %v916
        %v918 = vrot.slane %v913, %v917
        %v936 = vunpack.c.l.b16 %v896
        %v937 = vunpack.c.l.b16 %v897
        %v938 = vunpack.c.l.b16 %v898
        %v939 = vunpack.c.l.b16 %v899
        %v940 = vunpack.c.l.b16 %v900
        %v941 = vunpack.c.l.b16 %v901
        %v942 = vunpack.c.l.b16 %v902
        %v943 = vunpack.c.l.b16 %v903
        %v944 = vunpack.c.l.b16 %v904
        %v945 = vunpack.c.l.b16 %v905
        %v946 = vunpack.c.l.b16 %v906
        %v947 = vunpack.c.l.b16 %v907
        %v948 = vunpack.c.l.b16 %v908
        %v949 = vunpack.c.l.b16 %v909
        %v950 = vunpack.c.l.b16 %v910
        %v951 = vunpack.c.l.b16 %v911
        %v952 = vpack.c.b16 %v937, %v936
        %v953 = vpack.c.b16 %v939, %v938
        %v954 = vpack.c.b16 %v941, %v940
        %v955 = vpack.c.b16 %v943, %v942
        %v956 = vpack.c.b16 %v945, %v944
        %v957 = vpack.c.b16 %v947, %v946
        %v958 = vpack.c.b16 %v949, %v948
        %v959 = vpack.c.b16 %v951, %v950
        %968 = vmatprep.subr.bf16.mxu0 0
        %969 = vmatpush1.bf16.msra.mxu0 %v952
        %970 = vmatprep.subr.bf16.mxu0 0
        %971 = vmatpush1.bf16.msra.mxu0 %v953
        %972 = vmatprep.subr.bf16.mxu0 0
        %973 = vmatpush1.bf16.msra.mxu0 %v954
        %974 = vmatprep.subr.bf16.mxu0 0
        %975 = vmatpush1.bf16.msra.mxu0 %v955
        %976 = vmatprep.subr.bf16.mxu0 0
        %977 = vmatpush1.bf16.msra.mxu0 %v956
        %978 = vmatprep.subr.bf16.mxu0 0
        %979 = vmatpush1.bf16.msra.mxu0 %v957
        %980 = vmatprep.subr.bf16.mxu0 0
        %981 = vmatpush1.bf16.msra.mxu0 %v958
        %982 = vmatprep.subr.bf16.mxu0 0
        %983 = vmatpush1.bf16.msra.mxu0 %v959
        %984 = vmatprep.subr.bf16.mxu0 0
        %985 = vmatpush1.bf16.msra.mxu0 0
        %986 = vmatprep.subr.bf16.mxu0 0
        %987 = vmatpush1.bf16.msra.mxu0 0
        %988 = vmatprep.subr.bf16.mxu0 0
        %989 = vmatpush1.bf16.msra.mxu0 0
        %990 = vmatprep.subr.bf16.mxu0 0
        %991 = vmatpush1.bf16.msra.mxu0 0
        %992 = vmatprep.subr.bf16.mxu0 0
        %993 = vmatpush1.bf16.msra.mxu0 0
        %994 = vmatprep.subr.bf16.mxu0 0
        %995 = vmatpush1.bf16.msra.mxu0 0
        %996 = vmatprep.subr.bf16.mxu0 0
        %997 = vmatpush1.bf16.msra.mxu0 0
        %998 = vmatprep.subr.bf16.mxu0 0
        %999 = vmatpush1.bf16.msra.mxu0 0
        %1000 = vmatprep.mubr.bf16.mxu0 0
        %1001 = vmatmul.mubr.bf16.gmra.mrb[0].mxu0 %v893
        %v1002 = vpop.f32.mrb[0].mxu0
        %v1003 = vadd.f32 %v918, %v1002
        %v1004 = vpop.f32.mrb[0].mxu0
        %v1005 = vpop.f32.mrb[0].mxu0
        %v1006 = vadd.f32 %v918, %v1005
        %v1007 = vpop.f32.mrb[0].mxu0
        %1008 = vmatprep.mubr.bf16.mxu0 0
        %1009 = vmatmul.mubr.bf16.gmra.mrb[0].mxu0 %v894
        %v1010 = vpop.f32.mrb[0].mxu0
        %v1011 = vadd.f32 %v918, %v1010
        %v1012 = vpop.f32.mrb[0].mxu0
        %v1013 = vpop.f32.mrb[0].mxu0
        %v1014 = vadd.f32 %v918, %v1013
        %v1015 = vpop.f32.mrb[0].mxu0
        %1016 = vdwg.mxu0
        %v1017 = vmax.f32 %v1003, 0.0
        %v1018 = vmax.f32 %v1006, 0.0
        %v1019 = vmax.f32 %v1011, 0.0
        %v1020 = vmax.f32 %v1014, 0.0
        %v1021 = vpack.c.bf16 %v1018, %v1017
        %v1022 = vpack.c.bf16 %v1020, %v1019
        %s1023 = scalar_lea.vmem [#allocation2], 320
        %v1024 = vld [vmem:[%s1023] sm:$0xf]
        %v1025 = vld [vmem:[%s1023 + $0x4] sm:$0xf]
        %v1026 = vld [vmem:[%s1023 + $0x8] sm:$0xf]
        %v1027 = vld [vmem:[%s1023 + $0xc] sm:$0xf]
        %v1028 = vld [vmem:[%s1023 + $0x10] sm:$0xf]
        %v1029 = vld [vmem:[%s1023 + $0x14] sm:$0xf]
        %v1030 = vld [vmem:[%s1023 + $0x18] sm:$0xf]
        %v1031 = vld [vmem:[%s1023 + $0x1c] sm:$0xf]
        %v1032 = vld [vmem:[%s1023 + $0x20] sm:$0xf]
        %v1033 = vld [vmem:[%s1023 + $0x24] sm:$0xf]
        %v1034 = vld [vmem:[%s1023 + $0x28] sm:$0xf]
        %v1035 = vld [vmem:[%s1023 + $0x2c] sm:$0xf]
        %v1036 = vld [vmem:[%s1023 + $0x30] sm:$0xf]
        %v1037 = vld [vmem:[%s1023 + $0x34] sm:$0xf]
        %v1038 = vld [vmem:[%s1023 + $0x38] sm:$0xf]
        %v1039 = vld [vmem:[%s1023 + $0x3c] sm:$0xf]
        %s1040 = scalar_lea.vmem %s4, 5
        %v1041 = vld [vmem:[%s1040] sm:$0x1]
        %v1043 = vlaneseq
        %v1044 = vshrl.u32 %v1043, 7
        %v1045 = vsub.s32 0, %v1044
        %v1046 = vrot.slane %v1041, %v1045
        %v1064 = vunpack.c.l.b16 %v1024
        %v1065 = vunpack.c.l.b16 %v1025
        %v1066 = vunpack.c.l.b16 %v1026
        %v1067 = vunpack.c.l.b16 %v1027
        %v1068 = vunpack.c.l.b16 %v1028
        %v1069 = vunpack.c.l.b16 %v1029
        %v1070 = vunpack.c.l.b16 %v1030
        %v1071 = vunpack.c.l.b16 %v1031
        %v1072 = vunpack.c.l.b16 %v1032
        %v1073 = vunpack.c.l.b16 %v1033
        %v1074 = vunpack.c.l.b16 %v1034
        %v1075 = vunpack.c.l.b16 %v1035
        %v1076 = vunpack.c.l.b16 %v1036
        %v1077 = vunpack.c.l.b16 %v1037
        %v1078 = vunpack.c.l.b16 %v1038
        %v1079 = vunpack.c.l.b16 %v1039
        %v1080 = vpack.c.b16 %v1065, %v1064
        %v1081 = vpack.c.b16 %v1067, %v1066
        %v1082 = vpack.c.b16 %v1069, %v1068
        %v1083 = vpack.c.b16 %v1071, %v1070
        %v1084 = vpack.c.b16 %v1073, %v1072
        %v1085 = vpack.c.b16 %v1075, %v1074
        %v1086 = vpack.c.b16 %v1077, %v1076
        %v1087 = vpack.c.b16 %v1079, %v1078
        %1096 = vmatprep.subr.bf16.mxu0 0
        %1097 = vmatpush1.bf16.msra.mxu0 %v1080
        %1098 = vmatprep.subr.bf16.mxu0 0
        %1099 = vmatpush1.bf16.msra.mxu0 %v1081
        %1100 = vmatprep.subr.bf16.mxu0 0
        %1101 = vmatpush1.bf16.msra.mxu0 %v1082
        %1102 = vmatprep.subr.bf16.mxu0 0
        %1103 = vmatpush1.bf16.msra.mxu0 %v1083
        %1104 = vmatprep.subr.bf16.mxu0 0
        %1105 = vmatpush1.bf16.msra.mxu0 %v1084
        %1106 = vmatprep.subr.bf16.mxu0 0
        %1107 = vmatpush1.bf16.msra.mxu0 %v1085
        %1108 = vmatprep.subr.bf16.mxu0 0
        %1109 = vmatpush1.bf16.msra.mxu0 %v1086
        %1110 = vmatprep.subr.bf16.mxu0 0
        %1111 = vmatpush1.bf16.msra.mxu0 %v1087
        %1112 = vmatprep.subr.bf16.mxu0 0
        %1113 = vmatpush1.bf16.msra.mxu0 0
        %1114 = vmatprep.subr.bf16.mxu0 0
        %1115 = vmatpush1.bf16.msra.mxu0 0
        %1116 = vmatprep.subr.bf16.mxu0 0
        %1117 = vmatpush1.bf16.msra.mxu0 0
        %1118 = vmatprep.subr.bf16.mxu0 0
        %1119 = vmatpush1.bf16.msra.mxu0 0
        %1120 = vmatprep.subr.bf16.mxu0 0
        %1121 = vmatpush1.bf16.msra.mxu0 0
        %1122 = vmatprep.subr.bf16.mxu0 0
        %1123 = vmatpush1.bf16.msra.mxu0 0
        %1124 = vmatprep.subr.bf16.mxu0 0
        %1125 = vmatpush1.bf16.msra.mxu0 0
        %1126 = vmatprep.subr.bf16.mxu0 0
        %1127 = vmatpush1.bf16.msra.mxu0 0
        %1128 = vmatprep.mubr.bf16.mxu0 0
        %1129 = vmatmul.mubr.bf16.gmra.mrb[0].mxu0 %v1021
        %v1130 = vpop.f32.mrb[0].mxu0
        %v1131 = vadd.f32 %v1046, %v1130
        %v1132 = vpop.f32.mrb[0].mxu0
        %v1133 = vpop.f32.mrb[0].mxu0
        %v1134 = vadd.f32 %v1046, %v1133
        %v1135 = vpop.f32.mrb[0].mxu0
        %1136 = vmatprep.mubr.bf16.mxu0 0
        %1137 = vmatmul.mubr.bf16.gmra.mrb[0].mxu0 %v1022
        %v1138 = vpop.f32.mrb[0].mxu0
        %v1139 = vadd.f32 %v1046, %v1138
        %v1140 = vpop.f32.mrb[0].mxu0
        %v1141 = vpop.f32.mrb[0].mxu0
        %v1142 = vadd.f32 %v1046, %v1141
        %v1143 = vpop.f32.mrb[0].mxu0
        %1144 = vdwg.mxu0
        %v1145 = vmax.f32 %v1131, 0.0
        %v1146 = vmax.f32 %v1134, 0.0
        %v1147 = vmax.f32 %v1139, 0.0
        %v1148 = vmax.f32 %v1142, 0.0
        %v1149 = vpack.c.bf16 %v1146, %v1145
        %v1150 = vpack.c.bf16 %v1148, %v1147
        %s1151 = scalar_lea.vmem [#allocation2], 384
        %v1152 = vld [vmem:[%s1151] sm:$0xf]
        %v1153 = vld [vmem:[%s1151 + $0x4] sm:$0xf]
        %v1154 = vld [vmem:[%s1151 + $0x8] sm:$0xf]
        %v1155 = vld [vmem:[%s1151 + $0xc] sm:$0xf]
        %v1156 = vld [vmem:[%s1151 + $0x10] sm:$0xf]
        %v1157 = vld [vmem:[%s1151 + $0x14] sm:$0xf]
        %v1158 = vld [vmem:[%s1151 + $0x18] sm:$0xf]
        %v1159 = vld [vmem:[%s1151 + $0x1c] sm:$0xf]
        %v1160 = vld [vmem:[%s1151 + $0x20] sm:$0xf]
        %v1161 = vld [vmem:[%s1151 + $0x24] sm:$0xf]
        %v1162 = vld [vmem:[%s1151 + $0x28] sm:$0xf]
        %v1163 = vld [vmem:[%s1151 + $0x2c] sm:$0xf]
        %v1164 = vld [vmem:[%s1151 + $0x30] sm:$0xf]
        %v1165 = vld [vmem:[%s1151 + $0x34] sm:$0xf]
        %v1166 = vld [vmem:[%s1151 + $0x38] sm:$0xf]
        %v1167 = vld [vmem:[%s1151 + $0x3c] sm:$0xf]
        %s1168 = scalar_lea.vmem %s4, 6
        %v1169 = vld [vmem:[%s1168] sm:$0x1]
        %v1171 = vlaneseq
        %v1172 = vshrl.u32 %v1171, 7
        %v1173 = vsub.s32 0, %v1172
        %v1174 = vrot.slane %v1169, %v1173
        %v1192 = vunpack.c.l.b16 %v1152
        %v1193 = vunpack.c.l.b16 %v1153
        %v1194 = vunpack.c.l.b16 %v1154
        %v1195 = vunpack.c.l.b16 %v1155
        %v1196 = vunpack.c.l.b16 %v1156
        %v1197 = vunpack.c.l.b16 %v1157
        %v1198 = vunpack.c.l.b16 %v1158
        %v1199 = vunpack.c.l.b16 %v1159
        %v1200 = vunpack.c.l.b16 %v1160
        %v1201 = vunpack.c.l.b16 %v1161
        %v1202 = vunpack.c.l.b16 %v1162
        %v1203 = vunpack.c.l.b16 %v1163
        %v1204 = vunpack.c.l.b16 %v1164
        %v1205 = vunpack.c.l.b16 %v1165
        %v1206 = vunpack.c.l.b16 %v1166
        %v1207 = vunpack.c.l.b16 %v1167
        %v1208 = vpack.c.b16 %v1193, %v1192
        %v1209 = vpack.c.b16 %v1195, %v1194
        %v1210 = vpack.c.b16 %v1197, %v1196
        %v1211 = vpack.c.b16 %v1199, %v1198
        %v1212 = vpack.c.b16 %v1201, %v1200
        %v1213 = vpack.c.b16 %v1203, %v1202
        %v1214 = vpack.c.b16 %v1205, %v1204
        %v1215 = vpack.c.b16 %v1207, %v1206
        %1224 = vmatprep.subr.bf16.mxu0 0
        %1225 = vmatpush1.bf16.msra.mxu0 %v1208
        %1226 = vmatprep.subr.bf16.mxu0 0
        %1227 = vmatpush1.bf16.msra.mxu0 %v1209
        %1228 = vmatprep.subr.bf16.mxu0 0
        %1229 = vmatpush1.bf16.msra.mxu0 %v1210
        %1230 = vmatprep.subr.bf16.mxu0 0
        %1231 = vmatpush1.bf16.msra.mxu0 %v1211
        %1232 = vmatprep.subr.bf16.mxu0 0
        %1233 = vmatpush1.bf16.msra.mxu0 %v1212
        %1234 = vmatprep.subr.bf16.mxu0 0
        %1235 = vmatpush1.bf16.msra.mxu0 %v1213
        %1236 = vmatprep.subr.bf16.mxu0 0
        %1237 = vmatpush1.bf16.msra.mxu0 %v1214
        %1238 = vmatprep.subr.bf16.mxu0 0
        %1239 = vmatpush1.bf16.msra.mxu0 %v1215
        %1240 = vmatprep.subr.bf16.mxu0 0
        %1241 = vmatpush1.bf16.msra.mxu0 0
        %1242 = vmatprep.subr.bf16.mxu0 0
        %1243 = vmatpush1.bf16.msra.mxu0 0
        %1244 = vmatprep.subr.bf16.mxu0 0
        %1245 = vmatpush1.bf16.msra.mxu0 0
        %1246 = vmatprep.subr.bf16.mxu0 0
        %1247 = vmatpush1.bf16.msra.mxu0 0
        %1248 = vmatprep.subr.bf16.mxu0 0
        %1249 = vmatpush1.bf16.msra.mxu0 0
        %1250 = vmatprep.subr.bf16.mxu0 0
        %1251 = vmatpush1.bf16.msra.mxu0 0
        %1252 = vmatprep.subr.bf16.mxu0 0
        %1253 = vmatpush1.bf16.msra.mxu0 0
        %1254 = vmatprep.subr.bf16.mxu0 0
        %1255 = vmatpush1.bf16.msra.mxu0 0
        %1256 = vmatprep.mubr.bf16.mxu0 0
        %1257 = vmatmul.mubr.bf16.gmra.mrb[0].mxu0 %v1149
        %v1258 = vpop.f32.mrb[0].mxu0
        %v1259 = vadd.f32 %v1174, %v1258
        %v1260 = vpop.f32.mrb[0].mxu0
        %v1261 = vpop.f32.mrb[0].mxu0
        %v1262 = vadd.f32 %v1174, %v1261
        %v1263 = vpop.f32.mrb[0].mxu0
        %1264 = vmatprep.mubr.bf16.mxu0 0
        %1265 = vmatmul.mubr.bf16.gmra.mrb[0].mxu0 %v1150
        %v1266 = vpop.f32.mrb[0].mxu0
        %v1267 = vadd.f32 %v1174, %v1266
        %v1268 = vpop.f32.mrb[0].mxu0
        %v1269 = vpop.f32.mrb[0].mxu0
        %v1270 = vadd.f32 %v1174, %v1269
        %v1271 = vpop.f32.mrb[0].mxu0
        %1272 = vdwg.mxu0
        %v1273 = vmax.f32 %v1259, 0.0
        %v1274 = vmax.f32 %v1262, 0.0
        %v1275 = vmax.f32 %v1267, 0.0
        %v1276 = vmax.f32 %v1270, 0.0
        %v1277 = vpack.c.bf16 %v1274, %v1273
        %v1278 = vpack.c.bf16 %v1276, %v1275
        %s1279 = scalar_lea.vmem [#allocation2], 448
        %v1280 = vld [vmem:[%s1279] sm:$0xf]
        %v1281 = vld [vmem:[%s1279 + $0x4] sm:$0xf]
        %v1282 = vld [vmem:[%s1279 + $0x8] sm:$0xf]
        %v1283 = vld [vmem:[%s1279 + $0xc] sm:$0xf]
        %v1284 = vld [vmem:[%s1279 + $0x10] sm:$0xf]
        %v1285 = vld [vmem:[%s1279 + $0x14] sm:$0xf]
        %v1286 = vld [vmem:[%s1279 + $0x18] sm:$0xf]
        %v1287 = vld [vmem:[%s1279 + $0x1c] sm:$0xf]
        %v1288 = vld [vmem:[%s1279 + $0x20] sm:$0xf]
        %v1289 = vld [vmem:[%s1279 + $0x24] sm:$0xf]
        %v1290 = vld [vmem:[%s1279 + $0x28] sm:$0xf]
        %v1291 = vld [vmem:[%s1279 + $0x2c] sm:$0xf]
        %v1292 = vld [vmem:[%s1279 + $0x30] sm:$0xf]
        %v1293 = vld [vmem:[%s1279 + $0x34] sm:$0xf]
        %v1294 = vld [vmem:[%s1279 + $0x38] sm:$0xf]
        %v1295 = vld [vmem:[%s1279 + $0x3c] sm:$0xf]
        %s1296 = scalar_lea.vmem %s4, 7
        %v1297 = vld [vmem:[%s1296] sm:$0x1]
        %v1299 = vlaneseq
        %v1300 = vshrl.u32 %v1299, 7
        %v1301 = vsub.s32 0, %v1300
        %v1302 = vrot.slane %v1297, %v1301
        %v1320 = vunpack.c.l.b16 %v1280
        %v1321 = vunpack.c.l.b16 %v1281
        %v1322 = vunpack.c.l.b16 %v1282
        %v1323 = vunpack.c.l.b16 %v1283
        %v1324 = vunpack.c.l.b16 %v1284
        %v1325 = vunpack.c.l.b16 %v1285
        %v1326 = vunpack.c.l.b16 %v1286
        %v1327 = vunpack.c.l.b16 %v1287
        %v1328 = vunpack.c.l.b16 %v1288
        %v1329 = vunpack.c.l.b16 %v1289
        %v1330 = vunpack.c.l.b16 %v1290
        %v1331 = vunpack.c.l.b16 %v1291
        %v1332 = vunpack.c.l.b16 %v1292
        %v1333 = vunpack.c.l.b16 %v1293
        %v1334 = vunpack.c.l.b16 %v1294
        %v1335 = vunpack.c.l.b16 %v1295
        %v1336 = vpack.c.b16 %v1321, %v1320
        %v1337 = vpack.c.b16 %v1323, %v1322
        %v1338 = vpack.c.b16 %v1325, %v1324
        %v1339 = vpack.c.b16 %v1327, %v1326
        %v1340 = vpack.c.b16 %v1329, %v1328
        %v1341 = vpack.c.b16 %v1331, %v1330
        %v1342 = vpack.c.b16 %v1333, %v1332
        %v1343 = vpack.c.b16 %v1335, %v1334
        %1352 = vmatprep.subr.bf16.mxu0 0
        %1353 = vmatpush1.bf16.msra.mxu0 %v1336
        %1354 = vmatprep.subr.bf16.mxu0 0
        %1355 = vmatpush1.bf16.msra.mxu0 %v1337
        %1356 = vmatprep.subr.bf16.mxu0 0
        %1357 = vmatpush1.bf16.msra.mxu0 %v1338
        %1358 = vmatprep.subr.bf16.mxu0 0
        %1359 = vmatpush1.bf16.msra.mxu0 %v1339
        %1360 = vmatprep.subr.bf16.mxu0 0
        %1361 = vmatpush1.bf16.msra.mxu0 %v1340
        %1362 = vmatprep.subr.bf16.mxu0 0
        %1363 = vmatpush1.bf16.msra.mxu0 %v1341
        %1364 = vmatprep.subr.bf16.mxu0 0
        %1365 = vmatpush1.bf16.msra.mxu0 %v1342
        %1366 = vmatprep.subr.bf16.mxu0 0
        %1367 = vmatpush1.bf16.msra.mxu0 %v1343
        %1368 = vmatprep.subr.bf16.mxu0 0
        %1369 = vmatpush1.bf16.msra.mxu0 0
        %1370 = vmatprep.subr.bf16.mxu0 0
        %1371 = vmatpush1.bf16.msra.mxu0 0
        %1372 = vmatprep.subr.bf16.mxu0 0
        %1373 = vmatpush1.bf16.msra.mxu0 0
        %1374 = vmatprep.subr.bf16.mxu0 0
        %1375 = vmatpush1.bf16.msra.mxu0 0
        %1376 = vmatprep.subr.bf16.mxu0 0
        %1377 = vmatpush1.bf16.msra.mxu0 0
        %1378 = vmatprep.subr.bf16.mxu0 0
        %1379 = vmatpush1.bf16.msra.mxu0 0
        %1380 = vmatprep.subr.bf16.mxu0 0
        %1381 = vmatpush1.bf16.msra.mxu0 0
        %1382 = vmatprep.subr.bf16.mxu0 0
        %1383 = vmatpush1.bf16.msra.mxu0 0
        %1384 = vmatprep.mubr.bf16.mxu0 0
        %1385 = vmatmul.mubr.bf16.gmra.mrb[0].mxu0 %v1277
        %v1386 = vpop.f32.mrb[0].mxu0
        %v1387 = vadd.f32 %v1302, %v1386
        %v1388 = vpop.f32.mrb[0].mxu0
        %v1389 = vpop.f32.mrb[0].mxu0
        %v1390 = vadd.f32 %v1302, %v1389
        %v1391 = vpop.f32.mrb[0].mxu0
        %1392 = vmatprep.mubr.bf16.mxu0 0
        %1393 = vmatmul.mubr.bf16.gmra.mrb[0].mxu0 %v1278
        %v1394 = vpop.f32.mrb[0].mxu0
        %v1395 = vadd.f32 %v1302, %v1394
        %v1396 = vpop.f32.mrb[0].mxu0
        %v1397 = vpop.f32.mrb[0].mxu0
        %v1398 = vadd.f32 %v1302, %v1397
        %v1399 = vpop.f32.mrb[0].mxu0
        %1400 = vdwg.mxu0
        %v1401 = vmax.f32 %v1387, 0.0
        %v1402 = vmax.f32 %v1390, 0.0
        %v1403 = vmax.f32 %v1395, 0.0
        %v1404 = vmax.f32 %v1398, 0.0
        %v1405 = vpack.c.bf16 %v1402, %v1401
        %v1406 = vpack.c.bf16 %v1404, %v1403
        %v1407 = vld [vmem:[%s5] sm:$0xf]
        %v1408 = vld [vmem:[%s5 + $0x4] sm:$0xf]
        %v1409 = vld [vmem:[%s5 + $0x8] sm:$0xf]
        %v1410 = vld [vmem:[%s5 + $0xc] sm:$0xf]
        %v1411 = vld [vmem:[%s5 + $0x10] sm:$0xf]
        %v1412 = vld [vmem:[%s5 + $0x14] sm:$0xf]
        %v1413 = vld [vmem:[%s5 + $0x18] sm:$0xf]
        %v1414 = vld [vmem:[%s5 + $0x1c] sm:$0xf]
        %v1415 = vld [vmem:[%s5 + $0x20] sm:$0xf]
        %v1416 = vld [vmem:[%s5 + $0x24] sm:$0xf]
        %v1417 = vld [vmem:[%s5 + $0x28] sm:$0xf]
        %v1418 = vld [vmem:[%s5 + $0x2c] sm:$0xf]
        %v1419 = vld [vmem:[%s5 + $0x30] sm:$0xf]
        %v1420 = vld [vmem:[%s5 + $0x34] sm:$0xf]
        %v1421 = vld [vmem:[%s5 + $0x38] sm:$0xf]
        %v1422 = vld [vmem:[%s5 + $0x3c] sm:$0xf]
        %v1423 = vld [vmem:[%s6] sm:$0x1]
        %v1425 = vlaneseq
        %v1426 = vshrl.u32 %v1425, 7
        %v1427 = vsub.s32 0, %v1426
        %v1428 = vrot.slane %v1423, %v1427
        %v1446 = vunpack.c.l.b16 %v1407
        %v1447 = vunpack.c.l.b16 %v1408
        %v1448 = vunpack.c.l.b16 %v1409
        %v1449 = vunpack.c.l.b16 %v1410
        %v1450 = vunpack.c.l.b16 %v1411
        %v1451 = vunpack.c.l.b16 %v1412
        %v1452 = vunpack.c.l.b16 %v1413
        %v1453 = vunpack.c.l.b16 %v1414
        %v1454 = vunpack.c.l.b16 %v1415
        %v1455 = vunpack.c.l.b16 %v1416
        %v1456 = vunpack.c.l.b16 %v1417
        %v1457 = vunpack.c.l.b16 %v1418
        %v1458 = vunpack.c.l.b16 %v1419
        %v1459 = vunpack.c.l.b16 %v1420
        %v1460 = vunpack.c.l.b16 %v1421
        %v1461 = vunpack.c.l.b16 %v1422
        %v1462 = vpack.c.b16 %v1447, %v1446
        %v1463 = vpack.c.b16 %v1449, %v1448
        %v1464 = vpack.c.b16 %v1451, %v1450
        %v1465 = vpack.c.b16 %v1453, %v1452
        %v1466 = vpack.c.b16 %v1455, %v1454
        %v1467 = vpack.c.b16 %v1457, %v1456
        %v1468 = vpack.c.b16 %v1459, %v1458
        %v1469 = vpack.c.b16 %v1461, %v1460
        %1478 = vmatprep.subr.bf16.mxu0 0
        %1479 = vmatpush1.bf16.msra.mxu0 %v1462
        %1480 = vmatprep.subr.bf16.mxu0 0
        %1481 = vmatpush1.bf16.msra.mxu0 %v1463
        %1482 = vmatprep.subr.bf16.mxu0 0
        %1483 = vmatpush1.bf16.msra.mxu0 %v1464
        %1484 = vmatprep.subr.bf16.mxu0 0
        %1485 = vmatpush1.bf16.msra.mxu0 %v1465
        %1486 = vmatprep.subr.bf16.mxu0 0
        %1487 = vmatpush1.bf16.msra.mxu0 %v1466
        %1488 = vmatprep.subr.bf16.mxu0 0
        %1489 = vmatpush1.bf16.msra.mxu0 %v1467
        %1490 = vmatprep.subr.bf16.mxu0 0
        %1491 = vmatpush1.bf16.msra.mxu0 %v1468
        %1492 = vmatprep.subr.bf16.mxu0 0
        %1493 = vmatpush1.bf16.msra.mxu0 %v1469
        %1494 = vmatprep.subr.bf16.mxu0 0
        %1495 = vmatpush1.bf16.msra.mxu0 0
        %1496 = vmatprep.subr.bf16.mxu0 0
        %1497 = vmatpush1.bf16.msra.mxu0 0
        %1498 = vmatprep.subr.bf16.mxu0 0
        %1499 = vmatpush1.bf16.msra.mxu0 0
        %1500 = vmatprep.subr.bf16.mxu0 0
        %1501 = vmatpush1.bf16.msra.mxu0 0
        %1502 = vmatprep.subr.bf16.mxu0 0
        %1503 = vmatpush1.bf16.msra.mxu0 0
        %1504 = vmatprep.subr.bf16.mxu0 0
        %1505 = vmatpush1.bf16.msra.mxu0 0
        %1506 = vmatprep.subr.bf16.mxu0 0
        %1507 = vmatpush1.bf16.msra.mxu0 0
        %1508 = vmatprep.subr.bf16.mxu0 0
        %1509 = vmatpush1.bf16.msra.mxu0 0
        %1510 = vmatprep.mubr.bf16.mxu0 0
        %1511 = vmatmul.mubr.bf16.gmra.mrb[0].mxu0 %v1405
        %v1512 = vpop.f32.mrb[0].mxu0
        %v1513 = vadd.f32 %v1428, %v1512
        %v1514 = vpop.f32.mrb[0].mxu0
        %v1515 = vpop.f32.mrb[0].mxu0
        %v1516 = vadd.f32 %v1428, %v1515
        %v1517 = vpop.f32.mrb[0].mxu0
        %1518 = vmatprep.mubr.bf16.mxu0 0
        %1519 = vmatmul.mubr.bf16.gmra.mrb[0].mxu0 %v1406
        %v1520 = vpop.f32.mrb[0].mxu0
        %v1521 = vadd.f32 %v1428, %v1520
        %v1522 = vpop.f32.mrb[0].mxu0
        %v1523 = vpop.f32.mrb[0].mxu0
        %v1524 = vadd.f32 %v1428, %v1523
        %v1525 = vpop.f32.mrb[0].mxu0
        %1526 = vdwg.mxu0
        %vm1527 = vcmask 15360
        %1528 = vst.msk [vmem:[%s295] sm:$0xff] %vm1527, %v1513
        %1529 = vst.msk [vmem:[%s295 + $0x8] sm:$0xff] %vm1527, %v1516
        %1530 = vst.msk [vmem:[%s295 + $0x10] sm:$0xff] %vm1527, %v1521
        %1531 = vst.msk [vmem:[%s295 + $0x18] sm:$0xff] %vm1527, %v1524
        %s1532 = smul.u32 4, %s19
        %p1533 = scmp.lt.s32.totalorder %s1532, 7
        %s1534 = scalar_select %p1533, %s1532, 7
        %s1535 = smul.addr %s1534, 8
        %s1536 = scalar_lea.vmem %s7, %s1535
        // Predicated region
        $region53: #{tpu_custom_call.1} parent=47 // pred_check
          %p1537 = pneg %p189
        $region54: #{tpu_custom_call.1} parent=47 // pred_check_branch
          %1539 = sbr.rel (%p1537) target = $region56
        $region55: #{tpu_custom_call.1} parent=47 // pred_region
          %s1540 = smul.u32 4, %s19
        $region56: #{tpu_custom_call.1} parent=47 // pred_fallthru
          _
      $region48: #{tpu_custom_call.1} parent=5 // pred_fallthru
        _
      %p1541 = scmp.le.s32.totalorder 2, %s14
      // Predicated region
      $region57: #{tpu_custom_call.1} parent=5 // pred_check
        %p1542 = pneg %p1541
      $region58: #{tpu_custom_call.1} parent=5 // pred_check_branch
        %1544 = sbr.rel (%p1542) target = $region60
      $region59: #{tpu_custom_call.1} parent=5 // pred_region
        %s1545 = ssub.s32 %s14, 2
        // Predicated region
        $region61: #{tpu_custom_call.1} parent=59 // pred_check
          %p1546 = pneg %p195
        $region62: #{tpu_custom_call.1} parent=59 // pred_check_branch
          %1548 = sbr.rel (%p1546) target = $region64
        $region63: #{tpu_custom_call.1} parent=59 // pred_region
          %s1549 = smul.u32 4, %s20
          %p1550 = scmp.lt.s32.totalorder %s1549, 7
          %s1551 = scalar_select %p1550, %s1549, 7
          %s1552 = smul.addr %s1551, 8
          %s1553 = scalar_lea.vmem %s7, %s1552
        $region64: #{tpu_custom_call.1} parent=59 // pred_fallthru
          _
      $region60: #{tpu_custom_call.1} parent=5 // pred_fallthru
        _
    $region6: #{tpu_custom_call.1} parent=1 // loop_footer
      %s18 = sadd.s32 1, %s14
    $region7: #{tpu_custom_call.1} parent=1 // loop_footer_branch
      %13 = sbr.rel target = $region3
    $region8: #{tpu_custom_call.1} parent=1 // loop_exit
      _
    %1554 = vsyncpa [#allocation3], 1
    %s1555 = scalar_lea.sflag [#allocation3], 1
    %1556 = vsyncpa %s1555, 1

</llo_original>
